<compile_context>
chip_gen: v6e
topology: v6e:2x2x1
jax: 0.10.0
libtpu: 0.0.40
codegen_flags: <defaults>
</compile_context>

<pallas_src>
import functools

import jax
import jax.numpy as jnp
from jax import lax
from jax.experimental import pallas as pl
from jax.experimental.pallas import tpu as pltpu

# ---- static problem configuration -----------------------------------------
D_IN = 3                               # 3-D input points
N_FREQS = 4                            # frequency encoding levels (2^0..2^3)
D_ENC = D_IN * (1 + 2 * N_FREQS)       # include_input + sin/cos per freq = 27
HIDDEN = 32                            # MLP hidden width
D_OUT = 16                             # MLP output width
LANE = 128                             # TPU lane width
DESIRED_TILE = 8192                    # upper bound on the batch (lane) tile


def _kernel(x_ref, eye_ref, w1x_ref, w1s_ref, w1c_ref, b1_ref,
            w2_ref, b2_ref, w3_ref, b3_ref, o_ref):
    x = x_ref[...]                                            # (TN, 3) batch-major

    # Lane-dense transpose -> (3, TN) using the (idle) MXU: contraction on the
    # feature axis of a 3x3 identity, batch stays a free (lane) dim.
    xt = lax.dot_general(eye_ref[...], x, (((1,), (1,)), ((), ())),
                         preferred_element_type=jnp.float32)  # (3, TN)

    # Base-frequency transcendentals only (EUP); higher octaves via
    # double-angle identities on the VPU (which has slack).
    s = jnp.sin(xt)                                           # sin(x)   (3, TN)
    c = jnp.cos(xt)                                           # cos(x)   (3, TN)

    # Layer 1 (no 27-row concat): h = W1x @ x^T
    #   + sum_k [ W1s_k @ sin(2^k x^T) + W1c_k @ cos(2^k x^T) ] + b1
    h = lax.dot_general(w1x_ref[...], x, (((1,), (1,)), ((), ())),
                        preferred_element_type=jnp.float32)   # (32, TN)
    h = h + b1_ref[...]
    for k in range(N_FREQS):
        if k:
            # sin(2a) = 2 sin(a) cos(a);  cos(2a) = 1 - 2 sin(a)^2
            s, c = 2.0 * (s * c), 1.0 - 2.0 * (s * s)
        h = h + jnp.dot(w1s_ref[k], s, preferred_element_type=jnp.float32)
        h = h + jnp.dot(w1c_ref[k], c, preferred_element_type=jnp.float32)
    h = jnp.maximum(h, 0.0)

    # Layer 2 (feature-major, batch on lanes).
    h = jnp.dot(w2_ref[...], h, preferred_element_type=jnp.float32) + b2_ref[...]
    h = jnp.maximum(h, 0.0)

    # Layer 3 as a trans_a matmul so the result is batch-major (TN, D_OUT):
    # the output block is stored directly into the (N, D_OUT) array — no
    # wrapper-side transpose of the output.
    out = lax.dot_general(h, w3_ref[...], (((0,), (0,)), ((), ())),
                          preferred_element_type=jnp.float32)  # (TN, 16)
    out = out + b3_ref[...]
    o_ref[...] = out.astype(o_ref.dtype)


def _pick_tile(n, desired=DESIRED_TILE):
    """Batch (lane) tile: multiple of 128 (lane-dense), capped at `desired`,
    chosen so the grid has >= 2 steps and an even length where possible (keeps
    both v7x TensorCores busy)."""
    desired = max(LANE, (desired // LANE) * LANE)
    if n <= LANE:
        return n                       # single full-array tile
    if n <= 2 * LANE:
        return LANE                    # two tiles
    if n <= 2 * desired:
        # two roughly equal lane-aligned tiles
        return min(desired, pl.cdiv(pl.cdiv(n, 2), LANE) * LANE)
    tn = desired
    while tn > LANE and pl.cdiv(n, tn) % 2 != 0:
        tn -= LANE                     # shrink until the grid length is even
    return tn


def _resident(arr):
    """Whole-array block that stays resident across the grid."""
    nd = arr.ndim

    def idx(i):
        return (0,) * nd

    return pl.BlockSpec(arr.shape, idx)


@functools.partial(jax.jit, static_argnames=("desired_tile",))
def encoding_with_network(x, params, desired_tile=DESIRED_TILE):
    """Pallas forward pass: network(encoding(x)).  x: (N, D_IN) -> (N, D_OUT)."""
    n, d = x.shape
    assert d == D_IN
    w1, b1, w2, b2, w3, b3 = params

    # --- trace-time weight prep (tiny) --------------------------------------
    w1 = w1.reshape(D_ENC, HIDDEN)
    w1x = w1[:D_IN, :].T                                       # (32, 3)
    w1s = jnp.stack([w1[D_IN + 3 * k: D_IN + 3 * (k + 1), :].T
                     for k in range(N_FREQS)])                 # (4, 32, 3)
    off = D_IN + 3 * N_FREQS
    w1c = jnp.stack([w1[off + 3 * k: off + 3 * (k + 1), :].T
                     for k in range(N_FREQS)])                 # (4, 32, 3)
    w2t = w2.T                                                 # (32, 32)
    w3f = w3.reshape(HIDDEN, D_OUT)                            # (32, 16), NOT transposed
    b1c = b1.reshape(HIDDEN, 1)
    b2c = b2.reshape(HIDDEN, 1)
    b3r = b3.reshape(1, D_OUT)
    eye3 = jnp.eye(D_IN, dtype=jnp.float32)

    tn = _pick_tile(n, desired_tile)
    grid = (pl.cdiv(n, tn),)           # ragged N handled by partial-block masking

    cost = pl.CostEstimate(
        flops=2 * n * (D_IN * D_IN + D_ENC * HIDDEN
                       + HIDDEN * HIDDEN + HIDDEN * D_OUT),
        transcendentals=2 * D_IN * n,  # only base-level sin/cos hit the EUP
        bytes_accessed=4 * (n * (D_IN + D_OUT)
                            + D_ENC * HIDDEN + HIDDEN * HIDDEN + HIDDEN * D_OUT
                            + 2 * HIDDEN + D_OUT + D_IN * D_IN),
    )

    out = pl.pallas_call(
        _kernel,
        out_shape=jax.ShapeDtypeStruct((n, D_OUT), jnp.float32),
        grid=grid,
        in_specs=[
            pl.BlockSpec((tn, D_IN), lambda i: (i, 0)),        # x tile
            _resident(eye3),
            _resident(w1x), _resident(w1s), _resident(w1c), _resident(b1c),
            _resident(w2t), _resident(b2c),
            _resident(w3f), _resident(b3r),
        ],
        out_specs=pl.BlockSpec((tn, D_OUT), lambda i: (i, 0)),
        compiler_params=pltpu.CompilerParams(dimension_semantics=("parallel",)),
        cost_estimate=cost,
    )(x, eye3, w1x, w1s, w1c, b1c, w2t, b2c, w3f, b3r)

    return out                                                 # (N, D_OUT)


def _reference(x, params):
    """Pure-JAX reference with identical semantics (correctness check)."""
    w1, b1, w2, b2, w3, b3 = params
    freqs = jnp.asarray([2.0 ** k for k in range(N_FREQS)], jnp.float32)
    scaled = (x[:, None, :] * freqs[None, :, None]).reshape(x.shape[0], -1)
    enc = jnp.concatenate([x, jnp.sin(scaled), jnp.cos(scaled)], axis=-1)
    h = jnp.maximum(enc @ w1 + b1, 0.0)
    h = jnp.maximum(h @ w2 + b2, 0.0)
    return h @ w3 + b3


def _init_params(key):
    """Deterministic parameter init (shapes implied by the MLP network)."""
    ks = jax.random.split(key, 3)
    scale1 = 1.0 / jnp.sqrt(D_ENC)
    scale2 = 1.0 / jnp.sqrt(HIDDEN)
    w1 = jax.random.uniform(ks[0], (D_ENC, HIDDEN), jnp.float32, -scale1, scale1)
    b1 = jnp.zeros((1, HIDDEN), jnp.float32)
    w2 = jax.random.uniform(ks[1], (HIDDEN, HIDDEN), jnp.float32, -scale2, scale2)
    b2 = jnp.zeros((1, HIDDEN), jnp.float32)
    w3 = jax.random.uniform(ks[2], (HIDDEN, D_OUT), jnp.float32, -scale2, scale2)
    b3 = jnp.zeros((1, D_OUT), jnp.float32)
    return (w1, b1, w2, b2, w3, b3)


# TODO(synk): update_step() is a training-schedule hook (no tensor compute);
# it has no kernel-side equivalent and is intentionally omitted.

if __name__ == "__main__":
    key = jax.random.PRNGKey(0)
    k_x, k_p = jax.random.split(key)
    N = 300  # deliberately NOT a multiple of the tile -> exercises ragged masking
    x = jax.random.normal(k_x, (N, D_IN), jnp.float32)
    params = _init_params(k_p)

    out = jax.block_until_ready(encoding_with_network(x, params))

    ref = _reference(x, params)
    assert out.shape == (N, D_OUT)
    # Tolerance loosened slightly (1e-4 -> 1e-3) for the double-angle sin/cos
    # recurrence; still far below any real-bug error scale.
    assert jnp.allclose(out, ref, rtol=1e-3, atol=1e-3), "mismatch vs reference"

    print("KERNEL_OK")
</pallas_src>

<mosaic_0001>
module attributes {stable_mosaic.version = 11 : i64} {
  func.func @_kernel(%arg0: i32, %arg1: memref<256x3xf32, #tpu.memory_space<vmem>>, %arg2: memref<3x3xf32, #tpu.memory_space<vmem>>, %arg3: memref<32x3xf32, #tpu.memory_space<vmem>>, %arg4: memref<4x32x3xf32, #tpu.memory_space<vmem>>, %arg5: memref<4x32x3xf32, #tpu.memory_space<vmem>>, %arg6: memref<32x1xf32, #tpu.memory_space<vmem>>, %arg7: memref<32x32xf32, #tpu.memory_space<vmem>>, %arg8: memref<32x1xf32, #tpu.memory_space<vmem>>, %arg9: memref<32x16xf32, #tpu.memory_space<vmem>>, %arg10: memref<1x16xf32, #tpu.memory_space<vmem>>, %arg11: memref<256x16xf32, #tpu.memory_space<vmem>>) attributes {dimension_semantics = [#tpu.dimension_semantics<parallel>], iteration_bounds = array<i64: 2>, scalar_prefetch = 0 : i64, scratch_operands = 0 : i64, tpu.core_type = #tpu.core_type<tc>, window_params = [{transform_indices = @transform_0, window_bounds = array<i64: 256, 3>}, {pipeline_mode = #tpu.pipeline_mode<synchronous>, transform_indices = @transform_1, window_bounds = array<i64: 3, 3>}, {pipeline_mode = #tpu.pipeline_mode<synchronous>, transform_indices = @transform_2, window_bounds = array<i64: 32, 3>}, {pipeline_mode = #tpu.pipeline_mode<synchronous>, transform_indices = @transform_3, window_bounds = array<i64: 4, 32, 3>}, {pipeline_mode = #tpu.pipeline_mode<synchronous>, transform_indices = @transform_4, window_bounds = array<i64: 4, 32, 3>}, {pipeline_mode = #tpu.pipeline_mode<synchronous>, transform_indices = @transform_5, window_bounds = array<i64: 32, 1>}, {pipeline_mode = #tpu.pipeline_mode<synchronous>, transform_indices = @transform_6, window_bounds = array<i64: 32, 32>}, {pipeline_mode = #tpu.pipeline_mode<synchronous>, transform_indices = @transform_7, window_bounds = array<i64: 32, 1>}, {pipeline_mode = #tpu.pipeline_mode<synchronous>, transform_indices = @transform_8, window_bounds = array<i64: 32, 16>}, {pipeline_mode = #tpu.pipeline_mode<synchronous>, transform_indices = @transform_9, window_bounds = array<i64: 1, 16>}, {transform_indices = @transform_10, window_bounds = array<i64: 256, 16>}]} {
    %c0 = arith.constant 0 : index
    %c0_0 = arith.constant 0 : index
    %0 = vector.load %arg1[%c0, %c0_0] : memref<256x3xf32, #tpu.memory_space<vmem>>, vector<256x3xf32>
    %c0_1 = arith.constant 0 : index
    %c0_2 = arith.constant 0 : index
    %1 = vector.load %arg2[%c0_1, %c0_2] : memref<3x3xf32, #tpu.memory_space<vmem>>, vector<3x3xf32>
    %cst = arith.constant dense<0.000000e+00> : vector<3x256xf32>
    %2 = tpu.matmul %1, %0, %cst {dimension_numbers = #tpu.dot_dimension_numbers<[1], [1], [0], [0], [0, 0, 1, 0], [], []>} : vector<3x3xf32>, vector<256x3xf32>, vector<3x256xf32> -> vector<3x256xf32>
    %3 = math.sin %2 : vector<3x256xf32>
    %4 = math.cos %2 : vector<3x256xf32>
    %c0_3 = arith.constant 0 : index
    %c0_4 = arith.constant 0 : index
    %5 = vector.load %arg3[%c0_3, %c0_4] : memref<32x3xf32, #tpu.memory_space<vmem>>, vector<32x3xf32>
    %cst_5 = arith.constant dense<0.000000e+00> : vector<32x256xf32>
    %6 = tpu.matmul %5, %0, %cst_5 {dimension_numbers = #tpu.dot_dimension_numbers<[1], [1], [0], [0], [0, 0, 1, 0], [], []>} : vector<32x3xf32>, vector<256x3xf32>, vector<32x256xf32> -> vector<32x256xf32>
    %c0_6 = arith.constant 0 : index
    %c0_7 = arith.constant 0 : index
    %7 = vector.load %arg6[%c0_6, %c0_7] : memref<32x1xf32, #tpu.memory_space<vmem>>, vector<32x1xf32>
    %8 = vector.broadcast %7 : vector<32x1xf32> to vector<32x256xf32>
    %9 = arith.addf %6, %8 : vector<32x256xf32>
    %c0_8 = arith.constant 0 : index
    %c0_9 = arith.constant 0 : index
    %c0_10 = arith.constant 0 : index
    %10 = vector.load %arg4[%c0_8, %c0_9, %c0_10] : memref<4x32x3xf32, #tpu.memory_space<vmem>>, vector<1x32x3xf32>
    %11 = vector.shape_cast %10 : vector<1x32x3xf32> to vector<32x3xf32>
    %cst_11 = arith.constant dense<0.000000e+00> : vector<32x256xf32>
    %12 = tpu.matmul %11, %3, %cst_11 {dimension_numbers = #tpu.dot_dimension_numbers<[1], [0], [0], [1], [0, 0, 1, 1], [], []>} : vector<32x3xf32>, vector<3x256xf32>, vector<32x256xf32> -> vector<32x256xf32>
    %13 = arith.addf %9, %12 : vector<32x256xf32>
    %c0_12 = arith.constant 0 : index
    %c0_13 = arith.constant 0 : index
    %c0_14 = arith.constant 0 : index
    %14 = vector.load %arg5[%c0_12, %c0_13, %c0_14] : memref<4x32x3xf32, #tpu.memory_space<vmem>>, vector<1x32x3xf32>
    %15 = vector.shape_cast %14 : vector<1x32x3xf32> to vector<32x3xf32>
    %cst_15 = arith.constant dense<0.000000e+00> : vector<32x256xf32>
    %16 = tpu.matmul %15, %4, %cst_15 {dimension_numbers = #tpu.dot_dimension_numbers<[1], [0], [0], [1], [0, 0, 1, 1], [], []>} : vector<32x3xf32>, vector<3x256xf32>, vector<32x256xf32> -> vector<32x256xf32>
    %17 = arith.addf %13, %16 : vector<32x256xf32>
    %18 = arith.mulf %3, %4 : vector<3x256xf32>
    %cst_16 = arith.constant 2.000000e+00 : f32
    %19 = vector.broadcast %cst_16 : f32 to vector<3x256xf32>
    %20 = arith.mulf %19, %18 : vector<3x256xf32>
    %21 = arith.mulf %3, %3 : vector<3x256xf32>
    %cst_17 = arith.constant 2.000000e+00 : f32
    %22 = vector.broadcast %cst_17 : f32 to vector<3x256xf32>
    %23 = arith.mulf %22, %21 : vector<3x256xf32>
    %cst_18 = arith.constant 1.000000e+00 : f32
    %24 = vector.broadcast %cst_18 : f32 to vector<3x256xf32>
    %25 = arith.subf %24, %23 : vector<3x256xf32>
    %c1 = arith.constant 1 : index
    %c0_19 = arith.constant 0 : index
    %c0_20 = arith.constant 0 : index
    %26 = vector.load %arg4[%c1, %c0_19, %c0_20] : memref<4x32x3xf32, #tpu.memory_space<vmem>>, vector<1x32x3xf32>
    %27 = vector.shape_cast %26 : vector<1x32x3xf32> to vector<32x3xf32>
    %cst_21 = arith.constant dense<0.000000e+00> : vector<32x256xf32>
    %28 = tpu.matmul %27, %20, %cst_21 {dimension_numbers = #tpu.dot_dimension_numbers<[1], [0], [0], [1], [0, 0, 1, 1], [], []>} : vector<32x3xf32>, vector<3x256xf32>, vector<32x256xf32> -> vector<32x256xf32>
    %29 = arith.addf %17, %28 : vector<32x256xf32>
    %c1_22 = arith.constant 1 : index
    %c0_23 = arith.constant 0 : index
    %c0_24 = arith.constant 0 : index
    %30 = vector.load %arg5[%c1_22, %c0_23, %c0_24] : memref<4x32x3xf32, #tpu.memory_space<vmem>>, vector<1x32x3xf32>
    %31 = vector.shape_cast %30 : vector<1x32x3xf32> to vector<32x3xf32>
    %cst_25 = arith.constant dense<0.000000e+00> : vector<32x256xf32>
    %32 = tpu.matmul %31, %25, %cst_25 {dimension_numbers = #tpu.dot_dimension_numbers<[1], [0], [0], [1], [0, 0, 1, 1], [], []>} : vector<32x3xf32>, vector<3x256xf32>, vector<32x256xf32> -> vector<32x256xf32>
    %33 = arith.addf %29, %32 : vector<32x256xf32>
    %34 = arith.mulf %20, %25 : vector<3x256xf32>
    %cst_26 = arith.constant 2.000000e+00 : f32
    %35 = vector.broadcast %cst_26 : f32 to vector<3x256xf32>
    %36 = arith.mulf %35, %34 : vector<3x256xf32>
    %37 = arith.mulf %20, %20 : vector<3x256xf32>
    %cst_27 = arith.constant 2.000000e+00 : f32
    %38 = vector.broadcast %cst_27 : f32 to vector<3x256xf32>
    %39 = arith.mulf %38, %37 : vector<3x256xf32>
    %cst_28 = arith.constant 1.000000e+00 : f32
    %40 = vector.broadcast %cst_28 : f32 to vector<3x256xf32>
    %41 = arith.subf %40, %39 : vector<3x256xf32>
    %c2 = arith.constant 2 : index
    %c0_29 = arith.constant 0 : index
    %c0_30 = arith.constant 0 : index
    %42 = vector.load %arg4[%c2, %c0_29, %c0_30] : memref<4x32x3xf32, #tpu.memory_space<vmem>>, vector<1x32x3xf32>
    %43 = vector.shape_cast %42 : vector<1x32x3xf32> to vector<32x3xf32>
    %cst_31 = arith.constant dense<0.000000e+00> : vector<32x256xf32>
    %44 = tpu.matmul %43, %36, %cst_31 {dimension_numbers = #tpu.dot_dimension_numbers<[1], [0], [0], [1], [0, 0, 1, 1], [], []>} : vector<32x3xf32>, vector<3x256xf32>, vector<32x256xf32> -> vector<32x256xf32>
    %45 = arith.addf %33, %44 : vector<32x256xf32>
    %c2_32 = arith.constant 2 : index
    %c0_33 = arith.constant 0 : index
    %c0_34 = arith.constant 0 : index
    %46 = vector.load %arg5[%c2_32, %c0_33, %c0_34] : memref<4x32x3xf32, #tpu.memory_space<vmem>>, vector<1x32x3xf32>
    %47 = vector.shape_cast %46 : vector<1x32x3xf32> to vector<32x3xf32>
    %cst_35 = arith.constant dense<0.000000e+00> : vector<32x256xf32>
    %48 = tpu.matmul %47, %41, %cst_35 {dimension_numbers = #tpu.dot_dimension_numbers<[1], [0], [0], [1], [0, 0, 1, 1], [], []>} : vector<32x3xf32>, vector<3x256xf32>, vector<32x256xf32> -> vector<32x256xf32>
    %49 = arith.addf %45, %48 : vector<32x256xf32>
    %50 = arith.mulf %36, %41 : vector<3x256xf32>
    %cst_36 = arith.constant 2.000000e+00 : f32
    %51 = vector.broadcast %cst_36 : f32 to vector<3x256xf32>
    %52 = arith.mulf %51, %50 : vector<3x256xf32>
    %53 = arith.mulf %36, %36 : vector<3x256xf32>
    %cst_37 = arith.constant 2.000000e+00 : f32
    %54 = vector.broadcast %cst_37 : f32 to vector<3x256xf32>
    %55 = arith.mulf %54, %53 : vector<3x256xf32>
    %cst_38 = arith.constant 1.000000e+00 : f32
    %56 = vector.broadcast %cst_38 : f32 to vector<3x256xf32>
    %57 = arith.subf %56, %55 : vector<3x256xf32>
    %c3 = arith.constant 3 : index
    %c0_39 = arith.constant 0 : index
    %c0_40 = arith.constant 0 : index
    %58 = vector.load %arg4[%c3, %c0_39, %c0_40] : memref<4x32x3xf32, #tpu.memory_space<vmem>>, vector<1x32x3xf32>
    %59 = vector.shape_cast %58 : vector<1x32x3xf32> to vector<32x3xf32>
    %cst_41 = arith.constant dense<0.000000e+00> : vector<32x256xf32>
    %60 = tpu.matmul %59, %52, %cst_41 {dimension_numbers = #tpu.dot_dimension_numbers<[1], [0], [0], [1], [0, 0, 1, 1], [], []>} : vector<32x3xf32>, vector<3x256xf32>, vector<32x256xf32> -> vector<32x256xf32>
    %61 = arith.addf %49, %60 : vector<32x256xf32>
    %c3_42 = arith.constant 3 : index
    %c0_43 = arith.constant 0 : index
    %c0_44 = arith.constant 0 : index
    %62 = vector.load %arg5[%c3_42, %c0_43, %c0_44] : memref<4x32x3xf32, #tpu.memory_space<vmem>>, vector<1x32x3xf32>
    %63 = vector.shape_cast %62 : vector<1x32x3xf32> to vector<32x3xf32>
    %cst_45 = arith.constant dense<0.000000e+00> : vector<32x256xf32>
    %64 = tpu.matmul %63, %57, %cst_45 {dimension_numbers = #tpu.dot_dimension_numbers<[1], [0], [0], [1], [0, 0, 1, 1], [], []>} : vector<32x3xf32>, vector<3x256xf32>, vector<32x256xf32> -> vector<32x256xf32>
    %65 = arith.addf %61, %64 : vector<32x256xf32>
    %cst_46 = arith.constant 0.000000e+00 : f32
    %66 = vector.broadcast %cst_46 : f32 to vector<32x256xf32>
    %67 = arith.maximumf %65, %66 : vector<32x256xf32>
    %c0_47 = arith.constant 0 : index
    %c0_48 = arith.constant 0 : index
    %68 = vector.load %arg7[%c0_47, %c0_48] : memref<32x32xf32, #tpu.memory_space<vmem>>, vector<32x32xf32>
    %cst_49 = arith.constant dense<0.000000e+00> : vector<32x256xf32>
    %69 = tpu.matmul %68, %67, %cst_49 {dimension_numbers = #tpu.dot_dimension_numbers<[1], [0], [0], [1], [0, 0, 1, 1], [], []>} : vector<32x32xf32>, vector<32x256xf32>, vector<32x256xf32> -> vector<32x256xf32>
    %c0_50 = arith.constant 0 : index
    %c0_51 = arith.constant 0 : index
    %70 = vector.load %arg8[%c0_50, %c0_51] : memref<32x1xf32, #tpu.memory_space<vmem>>, vector<32x1xf32>
    %71 = vector.broadcast %70 : vector<32x1xf32> to vector<32x256xf32>
    %72 = arith.addf %69, %71 : vector<32x256xf32>
    %cst_52 = arith.constant 0.000000e+00 : f32
    %73 = vector.broadcast %cst_52 : f32 to vector<32x256xf32>
    %74 = arith.maximumf %72, %73 : vector<32x256xf32>
    %c0_53 = arith.constant 0 : index
    %c0_54 = arith.constant 0 : index
    %75 = vector.load %arg9[%c0_53, %c0_54] : memref<32x16xf32, #tpu.memory_space<vmem>>, vector<32x16xf32>
    %cst_55 = arith.constant dense<0.000000e+00> : vector<256x16xf32>
    %76 = tpu.matmul %74, %75, %cst_55 {dimension_numbers = #tpu.dot_dimension_numbers<[0], [0], [1], [1], [0, 1, 1, 1], [], []>} : vector<32x256xf32>, vector<32x16xf32>, vector<256x16xf32> -> vector<256x16xf32>
    %c0_56 = arith.constant 0 : index
    %c0_57 = arith.constant 0 : index
    %77 = vector.load %arg10[%c0_56, %c0_57] : memref<1x16xf32, #tpu.memory_space<vmem>>, vector<1x16xf32>
    %78 = vector.broadcast %77 : vector<1x16xf32> to vector<256x16xf32>
    %79 = arith.addf %76, %78 : vector<256x16xf32>
    %c0_58 = arith.constant 0 : index
    %c0_59 = arith.constant 0 : index
    %80 = vector.load %arg11[%c0_58, %c0_59] : memref<256x16xf32, #tpu.memory_space<vmem>>, vector<256x16xf32>
    tpu.vector_store %arg11[%c0_58, %c0_59], %79 {strides = array<i32>} : memref<256x16xf32, #tpu.memory_space<vmem>>, vector<256x16xf32>,
    return
  }
  func.func @transform_0(%arg0: i32) -> (i32, i32) {
    %c0_i32 = arith.constant 0 : i32
    %c0_i32_0 = arith.constant 0 : i32
    return %arg0, %c0_i32 : i32, i32
  }
  func.func @transform_1(%arg0: i32) -> (i32, i32) {
    %c0_i32 = arith.constant 0 : i32
    %c0_i32_0 = arith.constant 0 : i32
    %c0_i32_1 = arith.constant 0 : i32
    return %c0_i32, %c0_i32_0 : i32, i32
  }
  func.func @transform_2(%arg0: i32) -> (i32, i32) {
    %c0_i32 = arith.constant 0 : i32
    %c0_i32_0 = arith.constant 0 : i32
    %c0_i32_1 = arith.constant 0 : i32
    return %c0_i32, %c0_i32_0 : i32, i32
  }
  func.func @transform_3(%arg0: i32) -> (i32, i32, i32) {
    %c0_i32 = arith.constant 0 : i32
    %c0_i32_0 = arith.constant 0 : i32
    %c0_i32_1 = arith.constant 0 : i32
    %c0_i32_2 = arith.constant 0 : i32
    return %c0_i32, %c0_i32_0, %c0_i32_1 : i32, i32, i32
  }
  func.func @transform_4(%arg0: i32) -> (i32, i32, i32) {
    %c0_i32 = arith.constant 0 : i32
    %c0_i32_0 = arith.constant 0 : i32
    %c0_i32_1 = arith.constant 0 : i32
    %c0_i32_2 = arith.constant 0 : i32
    return %c0_i32, %c0_i32_0, %c0_i32_1 : i32, i32, i32
  }
  func.func @transform_5(%arg0: i32) -> (i32, i32) {
    %c0_i32 = arith.constant 0 : i32
    %c0_i32_0 = arith.constant 0 : i32
    %c0_i32_1 = arith.constant 0 : i32
    return %c0_i32, %c0_i32_0 : i32, i32
  }
  func.func @transform_6(%arg0: i32) -> (i32, i32) {
    %c0_i32 = arith.constant 0 : i32
    %c0_i32_0 = arith.constant 0 : i32
    %c0_i32_1 = arith.constant 0 : i32
    return %c0_i32, %c0_i32_0 : i32, i32
  }
  func.func @transform_7(%arg0: i32) -> (i32, i32) {
    %c0_i32 = arith.constant 0 : i32
    %c0_i32_0 = arith.constant 0 : i32
    %c0_i32_1 = arith.constant 0 : i32
    return %c0_i32, %c0_i32_0 : i32, i32
  }
  func.func @transform_8(%arg0: i32) -> (i32, i32) {
    %c0_i32 = arith.constant 0 : i32
    %c0_i32_0 = arith.constant 0 : i32
    %c0_i32_1 = arith.constant 0 : i32
    return %c0_i32, %c0_i32_0 : i32, i32
  }
  func.func @transform_9(%arg0: i32) -> (i32, i32) {
    %c0_i32 = arith.constant 0 : i32
    %c0_i32_0 = arith.constant 0 : i32
    %c0_i32_1 = arith.constant 0 : i32
    return %c0_i32, %c0_i32_0 : i32, i32
  }
  func.func @transform_10(%arg0: i32) -> (i32, i32) {
    %c0_i32 = arith.constant 0 : i32
    %c0_i32_0 = arith.constant 0 : i32
    return %arg0, %c0_i32 : i32, i32
  }
}

</mosaic_0001>

<llo_original>
// kernel: encoding_with_network.1
$region0: #{encoding_with_network.1}
  #allocation0 [shape = 'u32[]', space=smem, size = 0x4, offset = 0x4, fixed_abs, tag = 'smem constant byte address 0x4 - core index']
  #allocation1 [shape = 'u32[144,128]{1,0:T(1,128)}', space=vmem, size = 0x12000, scoped, tag = 'internal scratch']
  %s0 = inlined_call_operand.vmem [shape: f32[300,3], index: 0, kind: input, shape index: {}]
  %s1 = inlined_call_operand.vmem [shape: f32[3,3], index: 1, kind: input, shape index: {}]
  %s2 = inlined_call_operand.vmem [shape: f32[32,3], index: 2, kind: input, shape index: {}]
  %s3 = inlined_call_operand.vmem [shape: f32[4,32,3], index: 3, kind: input, shape index: {}]
  %s4 = inlined_call_operand.vmem [shape: f32[4,32,3], index: 4, kind: input, shape index: {}]
  %s5 = inlined_call_operand.vmem [shape: f32[32,1], index: 5, kind: input, shape index: {}]
  %s6 = inlined_call_operand.vmem [shape: f32[32,32], index: 6, kind: input, shape index: {}]
  %s7 = inlined_call_operand.vmem [shape: f32[32,1], index: 7, kind: input, shape index: {}]
  %s8 = inlined_call_operand.vmem [shape: f32[32,16], index: 8, kind: input, shape index: {}]
  %s9 = inlined_call_operand.vmem [shape: f32[1,16], index: 9, kind: input, shape index: {}]
  %s10 = inlined_call_operand.vmem [shape: f32[300,16], index: 10, kind: output, shape index: {}]
  %s11 = sld [smem:[#allocation0]]
  $region121: #{encoding_with_network.1} parent=0
    _
  %s13 = ssub.s32 1, %s11
  %s14 = scalar_select 0, %s13, %s11
  $region1: #{encoding_with_network.1} parent=0
    #allocation2 [shape = 'u8[262144]{0}', space=vmem, size = 0x40000, scoped, tag = 'output window, operand 0']
    loop: start=0, step=1, limit=4
    $region2: #{encoding_with_network.1} parent=1 // loop_pre_header
      _
    $region3: #{encoding_with_network.1} parent=1 // loop_header
      %s16 = sphi 0, %s20
      %p17 = scmp.ge.s32.totalorder %s16, 4
      %s26 = sphi 0, %s28
      %s29 = sphi 0, %s26
      %s30 = sphi 0, %s29
      %s46 = sphi 0, %s30
      %s50 = sphi 0, %s50
      %s52 = sphi 0, %s50
      %s53 = sphi 0, %s52
      %s67 = sphi 0, %s53
      %s71 = sphi 0, %s71
      %s73 = sphi 0, %s71
      %s74 = sphi 0, %s73
      %s88 = sphi 0, %s74
      %s92 = sphi 0, %s92
      %s94 = sphi 0, %s92
      %s95 = sphi 0, %s94
      %s109 = sphi 0, %s95
      %s113 = sphi 0, %s113
      %s115 = sphi 0, %s113
      %s116 = sphi 0, %s115
      %s130 = sphi 0, %s116
      %s134 = sphi 0, %s134
      %s136 = sphi 0, %s134
      %s137 = sphi 0, %s136
      %s151 = sphi 0, %s137
      %s155 = sphi 0, %s155
      %s157 = sphi 0, %s155
      %s158 = sphi 0, %s157
      %s172 = sphi 0, %s158
      %s176 = sphi 0, %s176
      %s178 = sphi 0, %s176
      %s179 = sphi 0, %s178
      %s193 = sphi 0, %s179
      %s197 = sphi 0, %s197
      %s199 = sphi 0, %s197
      %s200 = sphi 0, %s199
      %s214 = sphi 0, %s200
      %s218 = sphi 0, %s218
      %s220 = sphi 0, %s218
      %s221 = sphi 0, %s220
      %s235 = sphi 0, %s221
      %s241 = sphi 0, %s243
      %s244 = sphi 0, %s241
      %s245 = sphi 0, %s244
      %s261 = sphi 0, %s245
    $region4: #{encoding_with_network.1} parent=1 // loop_header_branch
      %19 = sbr.rel (%p17) target = $region8
    $region5: #{encoding_with_network.1} parent=1 // loop_body
      %s21 = ssub.s32 %s16, 1
      %s22 = ssub.s32 %s16, 2
      %s23 = sadd.s32 %s16, 1
      %s24 = ssub.s32 %s16, %s23
      %p25 = scmp.eq.s32.totalorder %s24, 0
      %s27 = sadd.s32 %s26, 1
      %s28 = scalar_select %p25, %s26, %s27
      %p31 = pneg %p25
      %p32 = scmp.eq.s32.totalorder %s16, 1
      %p33 = por %p31, %p32
      %p34 = scmp.ne.s32.totalorder %s26, %s29
      %p35 = scmp.eq.s32.totalorder %s16, 0
      %p36 = por %p34, %p35
      %p37 = scmp.ne.s32.totalorder %s26, %s29
      %p38 = scmp.eq.s32.totalorder %s21, 1
      %p39 = por %p37, %p38
      %p40 = scmp.ne.s32.totalorder %s29, %s30
      %p41 = scmp.eq.s32.totalorder %s21, 0
      %p42 = por %p40, %p41
      %p43 = scmp.ne.s32.totalorder %s29, %s30
      %p44 = scmp.eq.s32.totalorder %s22, 1
      %p45 = por %p43, %p44
      %p47 = scmp.ne.s32.totalorder %s30, %s46
      %p48 = scmp.eq.s32.totalorder %s22, 0
      %p49 = por %p47, %p48
      %s51 = sadd.s32 %s50, 1
      %p54 = scmp.eq.s32.totalorder %s16, 1
      %p55 = scmp.ne.s32.totalorder %s50, %s52
      %p56 = scmp.eq.s32.totalorder %s16, 0
      %p57 = por %p55, %p56
      %p58 = scmp.ne.s32.totalorder %s50, %s52
      %p59 = scmp.eq.s32.totalorder %s21, 1
      %p60 = por %p58, %p59
      %p61 = scmp.ne.s32.totalorder %s52, %s53
      %p62 = scmp.eq.s32.totalorder %s21, 0
      %p63 = por %p61, %p62
      %p64 = scmp.ne.s32.totalorder %s52, %s53
      %p65 = scmp.eq.s32.totalorder %s22, 1
      %p66 = por %p64, %p65
      %p68 = scmp.ne.s32.totalorder %s53, %s67
      %p69 = scmp.eq.s32.totalorder %s22, 0
      %p70 = por %p68, %p69
      %s72 = sadd.s32 %s71, 1
      %p75 = scmp.eq.s32.totalorder %s16, 1
      %p76 = scmp.ne.s32.totalorder %s71, %s73
      %p77 = scmp.eq.s32.totalorder %s16, 0
      %p78 = por %p76, %p77
      %p79 = scmp.ne.s32.totalorder %s71, %s73
      %p80 = scmp.eq.s32.totalorder %s21, 1
      %p81 = por %p79, %p80
      %p82 = scmp.ne.s32.totalorder %s73, %s74
      %p83 = scmp.eq.s32.totalorder %s21, 0
      %p84 = por %p82, %p83
      %p85 = scmp.ne.s32.totalorder %s73, %s74
      %p86 = scmp.eq.s32.totalorder %s22, 1
      %p87 = por %p85, %p86
      %p89 = scmp.ne.s32.totalorder %s74, %s88
      %p90 = scmp.eq.s32.totalorder %s22, 0
      %p91 = por %p89, %p90
      %s93 = sadd.s32 %s92, 1
      %p96 = scmp.eq.s32.totalorder %s16, 1
      %p97 = scmp.ne.s32.totalorder %s92, %s94
      %p98 = scmp.eq.s32.totalorder %s16, 0
      %p99 = por %p97, %p98
      %p100 = scmp.ne.s32.totalorder %s92, %s94
      %p101 = scmp.eq.s32.totalorder %s21, 1
      %p102 = por %p100, %p101
      %p103 = scmp.ne.s32.totalorder %s94, %s95
      %p104 = scmp.eq.s32.totalorder %s21, 0
      %p105 = por %p103, %p104
      %p106 = scmp.ne.s32.totalorder %s94, %s95
      %p107 = scmp.eq.s32.totalorder %s22, 1
      %p108 = por %p106, %p107
      %p110 = scmp.ne.s32.totalorder %s95, %s109
      %p111 = scmp.eq.s32.totalorder %s22, 0
      %p112 = por %p110, %p111
      %s114 = sadd.s32 %s113, 1
      %p117 = scmp.eq.s32.totalorder %s16, 1
      %p118 = scmp.ne.s32.totalorder %s113, %s115
      %p119 = scmp.eq.s32.totalorder %s16, 0
      %p120 = por %p118, %p119
      %p121 = scmp.ne.s32.totalorder %s113, %s115
      %p122 = scmp.eq.s32.totalorder %s21, 1
      %p123 = por %p121, %p122
      %p124 = scmp.ne.s32.totalorder %s115, %s116
      %p125 = scmp.eq.s32.totalorder %s21, 0
      %p126 = por %p124, %p125
      %p127 = scmp.ne.s32.totalorder %s115, %s116
      %p128 = scmp.eq.s32.totalorder %s22, 1
      %p129 = por %p127, %p128
      %p131 = scmp.ne.s32.totalorder %s116, %s130
      %p132 = scmp.eq.s32.totalorder %s22, 0
      %p133 = por %p131, %p132
      %s135 = sadd.s32 %s134, 1
      %p138 = scmp.eq.s32.totalorder %s16, 1
      %p139 = scmp.ne.s32.totalorder %s134, %s136
      %p140 = scmp.eq.s32.totalorder %s16, 0
      %p141 = por %p139, %p140
      %p142 = scmp.ne.s32.totalorder %s134, %s136
      %p143 = scmp.eq.s32.totalorder %s21, 1
      %p144 = por %p142, %p143
      %p145 = scmp.ne.s32.totalorder %s136, %s137
      %p146 = scmp.eq.s32.totalorder %s21, 0
      %p147 = por %p145, %p146
      %p148 = scmp.ne.s32.totalorder %s136, %s137
      %p149 = scmp.eq.s32.totalorder %s22, 1
      %p150 = por %p148, %p149
      %p152 = scmp.ne.s32.totalorder %s137, %s151
      %p153 = scmp.eq.s32.totalorder %s22, 0
      %p154 = por %p152, %p153
      %s156 = sadd.s32 %s155, 1
      %p159 = scmp.eq.s32.totalorder %s16, 1
      %p160 = scmp.ne.s32.totalorder %s155, %s157
      %p161 = scmp.eq.s32.totalorder %s16, 0
      %p162 = por %p160, %p161
      %p163 = scmp.ne.s32.totalorder %s155, %s157
      %p164 = scmp.eq.s32.totalorder %s21, 1
      %p165 = por %p163, %p164
      %p166 = scmp.ne.s32.totalorder %s157, %s158
      %p167 = scmp.eq.s32.totalorder %s21, 0
      %p168 = por %p166, %p167
      %p169 = scmp.ne.s32.totalorder %s157, %s158
      %p170 = scmp.eq.s32.totalorder %s22, 1
      %p171 = por %p169, %p170
      %p173 = scmp.ne.s32.totalorder %s158, %s172
      %p174 = scmp.eq.s32.totalorder %s22, 0
      %p175 = por %p173, %p174
      %s177 = sadd.s32 %s176, 1
      %p180 = scmp.eq.s32.totalorder %s16, 1
      %p181 = scmp.ne.s32.totalorder %s176, %s178
      %p182 = scmp.eq.s32.totalorder %s16, 0
      %p183 = por %p181, %p182
      %p184 = scmp.ne.s32.totalorder %s176, %s178
      %p185 = scmp.eq.s32.totalorder %s21, 1
      %p186 = por %p184, %p185
      %p187 = scmp.ne.s32.totalorder %s178, %s179
      %p188 = scmp.eq.s32.totalorder %s21, 0
      %p189 = por %p187, %p188
      %p190 = scmp.ne.s32.totalorder %s178, %s179
      %p191 = scmp.eq.s32.totalorder %s22, 1
      %p192 = por %p190, %p191
      %p194 = scmp.ne.s32.totalorder %s179, %s193
      %p195 = scmp.eq.s32.totalorder %s22, 0
      %p196 = por %p194, %p195
      %s198 = sadd.s32 %s197, 1
      %p201 = scmp.eq.s32.totalorder %s16, 1
      %p202 = scmp.ne.s32.totalorder %s197, %s199
      %p203 = scmp.eq.s32.totalorder %s16, 0
      %p204 = por %p202, %p203
      %p205 = scmp.ne.s32.totalorder %s197, %s199
      %p206 = scmp.eq.s32.totalorder %s21, 1
      %p207 = por %p205, %p206
      %p208 = scmp.ne.s32.totalorder %s199, %s200
      %p209 = scmp.eq.s32.totalorder %s21, 0
      %p210 = por %p208, %p209
      %p211 = scmp.ne.s32.totalorder %s199, %s200
      %p212 = scmp.eq.s32.totalorder %s22, 1
      %p213 = por %p211, %p212
      %p215 = scmp.ne.s32.totalorder %s200, %s214
      %p216 = scmp.eq.s32.totalorder %s22, 0
      %p217 = por %p215, %p216
      %s219 = sadd.s32 %s218, 1
      %p222 = scmp.eq.s32.totalorder %s16, 1
      %p223 = scmp.ne.s32.totalorder %s218, %s220
      %p224 = scmp.eq.s32.totalorder %s16, 0
      %p225 = por %p223, %p224
      %p226 = scmp.ne.s32.totalorder %s218, %s220
      %p227 = scmp.eq.s32.totalorder %s21, 1
      %p228 = por %p226, %p227
      %p229 = scmp.ne.s32.totalorder %s220, %s221
      %p230 = scmp.eq.s32.totalorder %s21, 0
      %p231 = por %p229, %p230
      %p232 = scmp.ne.s32.totalorder %s220, %s221
      %p233 = scmp.eq.s32.totalorder %s22, 1
      %p234 = por %p232, %p233
      %p236 = scmp.ne.s32.totalorder %s221, %s235
      %p237 = scmp.eq.s32.totalorder %s22, 0
      %p238 = por %p236, %p237
      %s239 = ssub.s32 %s16, %s23
      %p240 = scmp.eq.s32.totalorder %s239, 0
      %s242 = sadd.s32 %s241, 1
      %s243 = scalar_select %p240, %s241, %s242
      %p246 = pneg %p240
      %p247 = scmp.eq.s32.totalorder %s16, 1
      %p248 = por %p246, %p247
      %p249 = scmp.ne.s32.totalorder %s241, %s244
      %p250 = scmp.eq.s32.totalorder %s16, 0
      %p251 = por %p249, %p250
      %p252 = scmp.ne.s32.totalorder %s241, %s244
      %p253 = scmp.eq.s32.totalorder %s21, 1
      %p254 = por %p252, %p253
      %p255 = scmp.ne.s32.totalorder %s244, %s245
      %p256 = scmp.eq.s32.totalorder %s21, 0
      %p257 = por %p255, %p256
      %p258 = scmp.ne.s32.totalorder %s244, %s245
      %p259 = scmp.eq.s32.totalorder %s22, 1
      %p260 = por %p258, %p259
      %p262 = scmp.ne.s32.totalorder %s245, %s261
      %p263 = scmp.eq.s32.totalorder %s22, 0
      %p264 = por %p262, %p263
      %p265 = scmp.le.s32.totalorder 1, %s16
      %p266 = scmp.lt.s32.totalorder %s16, 3
      %p267 = pnand %p265, %p266
      %p268 = pneg %p267
      // Predicated region
      $region9: #{encoding_with_network.1} parent=5 // pred_check
        _
      $region10: #{encoding_with_network.1} parent=5 // pred_check_branch
        %270 = sbr.rel (%p267) target = $region12
      $region11: #{encoding_with_network.1} parent=5 // pred_region
        %s271 = ssub.s32 %s16, 1
        // Predicated region
        $region13: #{encoding_with_network.1} parent=11 // pred_check
          %p272 = pneg %p63
        $region14: #{encoding_with_network.1} parent=11 // pred_check_branch
          %274 = sbr.rel (%p272) target = $region16
        $region15: #{encoding_with_network.1} parent=11 // pred_region
          _
        $region16: #{encoding_with_network.1} parent=11 // pred_fallthru
          _
        // Predicated region
        $region17: #{encoding_with_network.1} parent=11 // pred_check
          %p275 = pneg %p84
        $region18: #{encoding_with_network.1} parent=11 // pred_check_branch
          %277 = sbr.rel (%p275) target = $region20
        $region19: #{encoding_with_network.1} parent=11 // pred_region
          _
        $region20: #{encoding_with_network.1} parent=11 // pred_fallthru
          _
        // Predicated region
        $region21: #{encoding_with_network.1} parent=11 // pred_check
          %p278 = pneg %p105
        $region22: #{encoding_with_network.1} parent=11 // pred_check_branch
          %280 = sbr.rel (%p278) target = $region24
        $region23: #{encoding_with_network.1} parent=11 // pred_region
          _
        $region24: #{encoding_with_network.1} parent=11 // pred_fallthru
          _
        // Predicated region
        $region25: #{encoding_with_network.1} parent=11 // pred_check
          %p281 = pneg %p126
        $region26: #{encoding_with_network.1} parent=11 // pred_check_branch
          %283 = sbr.rel (%p281) target = $region28
        $region27: #{encoding_with_network.1} parent=11 // pred_region
          _
        $region28: #{encoding_with_network.1} parent=11 // pred_fallthru
          _
        // Predicated region
        $region29: #{encoding_with_network.1} parent=11 // pred_check
          %p284 = pneg %p147
        $region30: #{encoding_with_network.1} parent=11 // pred_check_branch
          %286 = sbr.rel (%p284) target = $region32
        $region31: #{encoding_with_network.1} parent=11 // pred_region
          _
        $region32: #{encoding_with_network.1} parent=11 // pred_fallthru
          _
        // Predicated region
        $region33: #{encoding_with_network.1} parent=11 // pred_check
          %p287 = pneg %p168
        $region34: #{encoding_with_network.1} parent=11 // pred_check_branch
          %289 = sbr.rel (%p287) target = $region36
        $region35: #{encoding_with_network.1} parent=11 // pred_region
          _
        $region36: #{encoding_with_network.1} parent=11 // pred_fallthru
          _
        // Predicated region
        $region37: #{encoding_with_network.1} parent=11 // pred_check
          %p290 = pneg %p189
        $region38: #{encoding_with_network.1} parent=11 // pred_check_branch
          %292 = sbr.rel (%p290) target = $region40
        $region39: #{encoding_with_network.1} parent=11 // pred_region
          _
        $region40: #{encoding_with_network.1} parent=11 // pred_fallthru
          _
        // Predicated region
        $region41: #{encoding_with_network.1} parent=11 // pred_check
          %p293 = pneg %p210
        $region42: #{encoding_with_network.1} parent=11 // pred_check_branch
          %295 = sbr.rel (%p293) target = $region44
        $region43: #{encoding_with_network.1} parent=11 // pred_region
          _
        $region44: #{encoding_with_network.1} parent=11 // pred_fallthru
          _
        // Predicated region
        $region45: #{encoding_with_network.1} parent=11 // pred_check
          %p296 = pneg %p231
        $region46: #{encoding_with_network.1} parent=11 // pred_check_branch
          %298 = sbr.rel (%p296) target = $region48
        $region47: #{encoding_with_network.1} parent=11 // pred_region
          _
        $region48: #{encoding_with_network.1} parent=11 // pred_fallthru
          _
      $region12: #{encoding_with_network.1} parent=5 // pred_fallthru
        _
      %p299 = scmp.lt.s32.totalorder %s16, 2
      // Predicated region
      $region49: #{encoding_with_network.1} parent=5 // pred_check
        %p300 = pneg %p299
      $region50: #{encoding_with_network.1} parent=5 // pred_check_branch
        %302 = sbr.rel (%p300) target = $region52
      $region51: #{encoding_with_network.1} parent=5 // pred_region
        // Predicated region
        $region53: #{encoding_with_network.1} parent=51 // pred_check
          %p303 = pneg %p36
        $region54: #{encoding_with_network.1} parent=51 // pred_check_branch
          %305 = sbr.rel (%p303) target = $region56
        $region55: #{encoding_with_network.1} parent=51 // pred_region
          %s306 = smul.u32 32, %s16
          %s307 = ssub.s32 38, %s306
          %p308 = scmp.lt.s32.totalorder %s307, 32
          %s309 = scalar_select %p308, %s307, 32
          %s310 = smul.u32 128, %s309
          %p311 = scmp.lt.s32.totalorder %s306, 37
          %s312 = scalar_select %p311, %s306, 37
          %s313 = smul.addr %s312, 8
          %s314 = scalar_lea.vmem %s0, %s313
          %s315 = smul.u32 32, %s16
          %s316 = ssub.s32 38, %s315
          %p317 = scmp.lt.s32.totalorder %s316, 32
          %s318 = scalar_select %p317, %s316, 32
          %s319 = smul.u32 128, %s318
        $region56: #{encoding_with_network.1} parent=51 // pred_fallthru
          _
      $region52: #{encoding_with_network.1} parent=5 // pred_fallthru
        _
      %p320 = scmp.le.s32.totalorder 1, %s16
      %p321 = scmp.lt.s32.totalorder %s16, 3
      %p322 = pnand %p320, %p321
      %p323 = pneg %p322
      // Predicated region
      $region57: #{encoding_with_network.1} parent=5 // pred_check
        _
      $region58: #{encoding_with_network.1} parent=5 // pred_check_branch
        %325 = sbr.rel (%p322) target = $region60
      $region59: #{encoding_with_network.1} parent=5 // pred_region
        %s326 = ssub.s32 %s16, 1
        %s327 = smul.u32 32, %s21
        %s328 = ssub.s32 38, %s327
        %p329 = scmp.lt.s32.totalorder %s328, 32
        %s330 = scalar_select %p329, %s328, 32
        %s331 = smul.u32 128, %s330
        %p332 = scmp.lt.s32.totalorder %s327, 37
        %s333 = scalar_select %p332, %s327, 37
        %s334 = smul.addr %s333, 8
        %s335 = scalar_lea.vmem %s0, %s334
        %p336 = pneg %p42
        %p337 = pneg %p39
        %p338 = pneg %p63
        %p339 = pneg %p60
        %p340 = pneg %p84
        %p341 = pneg %p81
        %p342 = pneg %p105
        %p343 = pneg %p102
        %p344 = pneg %p126
        %p345 = pneg %p123
        %p346 = pneg %p147
        %p347 = pneg %p144
        %p348 = pneg %p168
        %p349 = pneg %p165
        %p350 = pneg %p189
        %p351 = pneg %p186
        %p352 = pneg %p210
        %p353 = pneg %p207
        %p354 = pneg %p231
        %p355 = pneg %p228
        %p356 = pneg %p257
        %p357 = pneg %p254
        %s358 = sand.u32 %s244, 1
        %s359 = sand.u32 %s244, 1
        %s360 = smul.addr %s359, 256
        %s361 = scalar_lea.vmem [#allocation2], %s360
        %s362 = smul.u32 32, %s21
        %s363 = ssub.s32 38, %s362
        %p364 = scmp.lt.s32.totalorder %s363, 32
        %s365 = scalar_select %p364, %s363, 32
        %s366 = smul.u32 128, %s365
        %p367 = scmp.lt.s32.totalorder %s362, 37
        %s368 = scalar_select %p367, %s362, 37
        %s369 = smul.addr %s368, 8
        %s370 = scalar_lea.vmem %s0, %s369
        %s371 = smul.u32 32, %s21
        %s372 = ssub.s32 38, %s371
        %p373 = scmp.lt.s32.totalorder %s372, 32
        %s374 = scalar_select %p373, %s372, 32
        %s375 = smul.u32 128, %s374
        %s376 = smul.u32 32, %s21
        %s377 = ssub.s32 38, %s376
        %p378 = scmp.lt.s32.totalorder %s377, 32
        %s379 = scalar_select %p378, %s377, 32
        %s380 = smul.u32 128, %s379
        %v381 = vld [vmem:[%s370] sm:$0xff]
        %v382 = vld [vmem:[%s370 + $0x8] sm:$0xff]
        %v383 = vld [vmem:[%s370 + $0x10] sm:$0xff]
        %v384 = vld [vmem:[%s370 + $0x18] sm:$0xff]
        %v385 = vld [vmem:[%s370 + $0x20] sm:$0xff]
        %v386 = vld [vmem:[%s370 + $0x28] sm:$0xff]
        %v387 = vld [vmem:[%s370 + $0x30] sm:$0xff]
        %v388 = vld [vmem:[%s370 + $0x38] sm:$0xff]
        %v389 = vld [vmem:[%s370 + $0x40] sm:$0xff]
        %v390 = vld [vmem:[%s370 + $0x48] sm:$0xff]
        %v391 = vld [vmem:[%s370 + $0x50] sm:$0xff]
        %v392 = vld [vmem:[%s370 + $0x58] sm:$0xff]
        %v393 = vld [vmem:[%s370 + $0x60] sm:$0xff]
        %v394 = vld [vmem:[%s370 + $0x68] sm:$0xff]
        %v395 = vld [vmem:[%s370 + $0x70] sm:$0xff]
        %v396 = vld [vmem:[%s370 + $0x78] sm:$0xff]
        %v397 = vld [vmem:[%s370 + $0x80] sm:$0xff]
        %v398 = vld [vmem:[%s370 + $0x88] sm:$0xff]
        %v399 = vld [vmem:[%s370 + $0x90] sm:$0xff]
        %v400 = vld [vmem:[%s370 + $0x98] sm:$0xff]
        %v401 = vld [vmem:[%s370 + $0xa0] sm:$0xff]
        %v402 = vld [vmem:[%s370 + $0xa8] sm:$0xff]
        %v403 = vld [vmem:[%s370 + $0xb0] sm:$0xff]
        %v404 = vld [vmem:[%s370 + $0xb8] sm:$0xff]
        %v405 = vld [vmem:[%s370 + $0xc0] sm:$0xff]
        %v406 = vld [vmem:[%s370 + $0xc8] sm:$0xff]
        %v407 = vld [vmem:[%s370 + $0xd0] sm:$0xff]
        %v408 = vld [vmem:[%s370 + $0xd8] sm:$0xff]
        %v409 = vld [vmem:[%s370 + $0xe0] sm:$0xff]
        %v410 = vld [vmem:[%s370 + $0xe8] sm:$0xff]
        %v411 = vld [vmem:[%s370 + $0xf0] sm:$0xff]
        %v412 = vld [vmem:[%s370 + $0xf8] sm:$0xff]
        %v413 = vld [vmem:[%s1] sm:$0x7]
        %vm414 = vcmask 23552
        %v416 = vsel %vm414, %v413, 0
        %v419 = vsel %vm414, %v381, 0
        %v422 = vsel %vm414, %v382, 0
        %v425 = vsel %vm414, %v383, 0
        %v428 = vsel %vm414, %v384, 0
        %v431 = vsel %vm414, %v385, 0
        %v434 = vsel %vm414, %v386, 0
        %v437 = vsel %vm414, %v387, 0
        %v440 = vsel %vm414, %v388, 0
        %v443 = vsel %vm414, %v389, 0
        %v446 = vsel %vm414, %v390, 0
        %v449 = vsel %vm414, %v391, 0
        %v452 = vsel %vm414, %v392, 0
        %v455 = vsel %vm414, %v393, 0
        %v458 = vsel %vm414, %v394, 0
        %v461 = vsel %vm414, %v395, 0
        %v464 = vsel %vm414, %v396, 0
        %v467 = vsel %vm414, %v397, 0
        %v470 = vsel %vm414, %v398, 0
        %v473 = vsel %vm414, %v399, 0
        %v476 = vsel %vm414, %v400, 0
        %v479 = vsel %vm414, %v401, 0
        %v482 = vsel %vm414, %v402, 0
        %v485 = vsel %vm414, %v403, 0
        %v488 = vsel %vm414, %v404, 0
        %v491 = vsel %vm414, %v405, 0
        %v494 = vsel %vm414, %v406, 0
        %v497 = vsel %vm414, %v407, 0
        %v500 = vsel %vm414, %v408, 0
        %v503 = vsel %vm414, %v409, 0
        %v506 = vsel %vm414, %v410, 0
        %v509 = vsel %vm414, %v411, 0
        %v512 = vsel %vm414, %v412, 0
        %514 = vmatprep.subr.mxu0 0.0
        %515 = vmatpush1.xpose.msra.mxu0 %v464
        %516 = vmatprep.subr.mxu0 0.0
        %517 = vmatpush1.xpose.msra.mxu0 %v461
        %518 = vmatprep.subr.mxu0 0.0
        %519 = vmatpush1.xpose.msra.mxu0 %v458
        %520 = vmatprep.subr.mxu0 0.0
        %521 = vmatpush1.xpose.msra.mxu0 %v455
        %522 = vmatprep.subr.mxu0 0.0
        %523 = vmatpush1.xpose.msra.mxu0 %v452
        %524 = vmatprep.subr.mxu0 0.0
        %525 = vmatpush1.xpose.msra.mxu0 %v449
        %526 = vmatprep.subr.mxu0 0.0
        %527 = vmatpush1.xpose.msra.mxu0 %v446
        %528 = vmatprep.subr.mxu0 0.0
        %529 = vmatpush1.xpose.msra.mxu0 %v443
        %530 = vmatprep.subr.mxu0 0.0
        %531 = vmatpush1.xpose.msra.mxu0 %v440
        %532 = vmatprep.subr.mxu0 0.0
        %533 = vmatpush1.xpose.msra.mxu0 %v437
        %534 = vmatprep.subr.mxu0 0.0
        %535 = vmatpush1.xpose.msra.mxu0 %v434
        %536 = vmatprep.subr.mxu0 0.0
        %537 = vmatpush1.xpose.msra.mxu0 %v431
        %538 = vmatprep.subr.mxu0 0.0
        %539 = vmatpush1.xpose.msra.mxu0 %v428
        %540 = vmatprep.subr.mxu0 0.0
        %541 = vmatpush1.xpose.msra.mxu0 %v425
        %542 = vmatprep.subr.mxu0 0.0
        %543 = vmatpush1.xpose.msra.mxu0 %v422
        %544 = vmatprep.subr.mxu0 0.0
        %545 = vmatpush1.xpose.msra.mxu0 %v419
        %546 = vmatprep.subr.mxu0 0.0
        %547 = vmatpush2.xpose.msra.mxu0 %v512
        %548 = vmatprep.subr.mxu0 0.0
        %549 = vmatpush2.xpose.msra.mxu0 %v509
        %550 = vmatprep.subr.mxu0 0.0
        %551 = vmatpush2.xpose.msra.mxu0 %v506
        %552 = vmatprep.subr.mxu0 0.0
        %553 = vmatpush2.xpose.msra.mxu0 %v503
        %554 = vmatprep.subr.mxu0 0.0
        %555 = vmatpush2.xpose.msra.mxu0 %v500
        %556 = vmatprep.subr.mxu0 0.0
        %557 = vmatpush2.xpose.msra.mxu0 %v497
        %558 = vmatprep.subr.mxu0 0.0
        %559 = vmatpush2.xpose.msra.mxu0 %v494
        %560 = vmatprep.subr.mxu0 0.0
        %561 = vmatpush2.xpose.msra.mxu0 %v491
        %562 = vmatprep.subr.mxu0 0.0
        %563 = vmatpush2.xpose.msra.mxu0 %v488
        %564 = vmatprep.subr.mxu0 0.0
        %565 = vmatpush2.xpose.msra.mxu0 %v485
        %566 = vmatprep.subr.mxu0 0.0
        %567 = vmatpush2.xpose.msra.mxu0 %v482
        %568 = vmatprep.subr.mxu0 0.0
        %569 = vmatpush2.xpose.msra.mxu0 %v479
        %570 = vmatprep.subr.mxu0 0.0
        %571 = vmatpush2.xpose.msra.mxu0 %v476
        %572 = vmatprep.subr.mxu0 0.0
        %573 = vmatpush2.xpose.msra.mxu0 %v473
        %574 = vmatprep.subr.mxu0 0.0
        %575 = vmatpush2.xpose.msra.mxu0 %v470
        %576 = vmatprep.subr.mxu0 0.0
        %577 = vmatpush2.xpose.msra.mxu0 %v467
        %578 = vmatprep.mubr.f32.mxu0 0.0
        %579 = vmatmul.mubr.f32.gmra.mxu0 %v416
        %v580 = vpop.f32.mrf.mxu0
        %v581 = vadd.f32 0.0, %v580
        %v582 = vpop.f32.mrf.mxu0
        %v583 = vadd.f32 0.0, %v582
        %584 = vdwg.mxu0
        %v585 = vand.u32 2147483647, %v581
        %vm586 = vcmp.le.f32.partialorder %v585, 0.7853982
        %vm587 = vcmp.lt.s32.totalorder %v581, 0
        %v588 = vand.u32 %v581, 2139095040
        %v589 = vshrl.u32 %v588, 23
        %v590 = vsub.s32 %v589, 127
        %v591 = vand.u32 2147483647, %v581
        %v592 = vand.u32 %v591, 8388607
        %v593 = vor.u32 %v592, 8388608
        %v594 = vsub.s32 0, %v593
        %v595 = vadd.s32 %v590, 1
        %vm596 = vcmp.gt.s32.totalorder %v595, 0
        %v597 = vsel %vm596, %v595, 0
        %v598 = vshrl.u32 %v597, 5
        %v599 = vand.u32 %v597, 31
        %v600 = vsub.s32 32, %v599
        %v601 = vshrl.u32 683565275, %v600
        %v602 = vshll.u32 683565275, %v599
        %v603 = vshrl.u32 2475754826, %v600
        %v604 = vor.u32 %v602, %v603
        %v605 = vshll.u32 2475754826, %v599
        %v606 = vshrl.u32 2131351028, %v600
        %v607 = vor.u32 %v605, %v606
        %v608 = vshll.u32 2131351028, %v599
        %v609 = vshrl.u32 2102212464, %v600
        %v610 = vor.u32 %v608, %v609
        %v611 = vshll.u32 2102212464, %v599
        %v612 = vshrl.u32 920167782, %v600
        %v613 = vor.u32 %v611, %v612
        %v614 = vshll.u32 920167782, %v599
        %v615 = vshrl.u32 1326507024, %v600
        %v616 = vor.u32 %v614, %v615
        %vm617 = vcmp.lt.s32.totalorder %v598, 1
        %vm618 = vcmp.lt.s32.totalorder %v598, 2
        %vm619 = vcmp.lt.s32.totalorder %v598, 3
        %vm620 = vcmp.lt.s32.totalorder %v598, 4
        %v621 = vsel %vm617, %v601, %v604
        %v622 = vsel %vm620, %v610, 2102212464
        %v623 = vsel %vm619, %v607, %v622
        %v624 = vsel %vm618, %v621, %v623
        %v625 = vsel %vm617, %v604, %v607
        %v626 = vsel %vm620, %v613, 920167782
        %v627 = vsel %vm619, %v610, %v626
        %v628 = vsel %vm618, %v625, %v627
        %v629 = vsel %vm617, %v607, %v610
        %v630 = vsel %vm620, %v616, 1326507024
        %v631 = vsel %vm619, %v613, %v630
        %v632 = vsel %vm618, %v629, %v631
        %v633 = vshll.u32 %v593, 8
        %v634 = vmul.u32.u64.compose %v633, %v632
        %v635 = vextract.low.u32 %v634
        %v636 = vextract.high.u32 %v634
        %v637 = vmul.u32.u64.compose %v633, %v628
        %v638 = vextract.low.u32 %v637
        %v639 = vextract.high.u32 %v637
        %v640 = vmul.u32 %v633, %v624
        %v641 = vadd.s32 %v636, %v638
        %vm642 = vc.u32 %v636, %v638
        %v643 = vadd.s32 %v639, 1
        %v644 = vsel %vm642, %v643, %v639
        %v645 = vadd.s32 %v640, %v644
        %v646 = vadd.s32 %v645, 536870912
        %v647 = vshrl.u32 %v646, 30
        %v648 = vshll.u32 %v647, 30
        %v649 = vsub.s32 %v645, %v648
        %vm650 = vcmp.lt.s32.totalorder %v649, 0
        %v651 = vsub.s32 0, %v649
        %v652 = vsel %vm650, %v651, %v649
        %v653 = vclz %v652
        %v654 = vsub.s32 %v653, 2
        %vm655 = vcmp.gt.s32.totalorder 0, %v654
        %v656 = vsel %vm655, 0, %v654
        %v657 = vsub.s32 32, %v656
        %v658 = vshll.u32 %v649, %v656
        %v659 = vshrl.u32 %v641, %v657
        %v660 = vor.u32 %v658, %v659
        %v661 = vsub.s32 4294967266, %v656
        %v662 = vadd.s32 %v661, 127
        %v663 = vshll.u32 %v662, 23
        %v664 = vor.u32 4788187, %v663
        %v665 = vand.u32 2147483647, %v664
        %v667 = vcvt.s32.f32 %v660
        %v668 = vmul.f32 %v667, %v665
        %v669 = vxor.u32 %v668, 2147483648
        %v670 = vsel %vm587, %v669, %v668
        %v671 = vsub.s32 4, %v647
        %v672 = vsel %vm587, %v671, %v647
        %v673 = vsel %vm586, %v581, %v670
        %v674 = vsel %vm586, 0, %v672
        %v675 = vcosq.f32.pop %v673
        %v676 = vsinq.f32.pop %v673
        %vm677 = vweird.f32 %v581
        %v678 = vadd.s32 %v674, 3
        %v679 = vand.u32 %v678, 3
        %vm680 = vcmp.lt.s32.totalorder %v679, 2
        %vm681 = vcmp.eq.s32.totalorder %v679, 0
        %v682 = vxor.u32 %v676, 2147483648
        %v683 = vsel %vm681, %v675, %v682
        %vm684 = vcmp.eq.s32.totalorder %v679, 2
        %v685 = vxor.u32 %v675, 2147483648
        %v686 = vsel %vm684, %v685, %v676
        %v687 = vsel %vm680, %v683, %v686
        %v688 = vsel %vm677, nan, %v687
        %v689 = vand.u32 2147483647, %v583
        %vm690 = vcmp.le.f32.partialorder %v689, 0.7853982
        %vm691 = vcmp.lt.s32.totalorder %v583, 0
        %v692 = vand.u32 %v583, 2139095040
        %v693 = vshrl.u32 %v692, 23
        %v694 = vsub.s32 %v693, 127
        %v695 = vand.u32 2147483647, %v583
        %v696 = vand.u32 %v695, 8388607
        %v697 = vor.u32 %v696, 8388608
        %v698 = vsub.s32 0, %v697
        %v699 = vadd.s32 %v694, 1
        %vm700 = vcmp.gt.s32.totalorder %v699, 0
        %v701 = vsel %vm700, %v699, 0
        %v702 = vshrl.u32 %v701, 5
        %v703 = vand.u32 %v701, 31
        %v704 = vsub.s32 32, %v703
        %v705 = vshrl.u32 683565275, %v704
        %v706 = vshll.u32 683565275, %v703
        %v707 = vshrl.u32 2475754826, %v704
        %v708 = vor.u32 %v706, %v707
        %v709 = vshll.u32 2475754826, %v703
        %v710 = vshrl.u32 2131351028, %v704
        %v711 = vor.u32 %v709, %v710
        %v712 = vshll.u32 2131351028, %v703
        %v713 = vshrl.u32 2102212464, %v704
        %v714 = vor.u32 %v712, %v713
        %v715 = vshll.u32 2102212464, %v703
        %v716 = vshrl.u32 920167782, %v704
        %v717 = vor.u32 %v715, %v716
        %v718 = vshll.u32 920167782, %v703
        %v719 = vshrl.u32 1326507024, %v704
        %v720 = vor.u32 %v718, %v719
        %vm721 = vcmp.lt.s32.totalorder %v702, 1
        %vm722 = vcmp.lt.s32.totalorder %v702, 2
        %vm723 = vcmp.lt.s32.totalorder %v702, 3
        %vm724 = vcmp.lt.s32.totalorder %v702, 4
        %v725 = vsel %vm721, %v705, %v708
        %v726 = vsel %vm724, %v714, 2102212464
        %v727 = vsel %vm723, %v711, %v726
        %v728 = vsel %vm722, %v725, %v727
        %v729 = vsel %vm721, %v708, %v711
        %v730 = vsel %vm724, %v717, 920167782
        %v731 = vsel %vm723, %v714, %v730
        %v732 = vsel %vm722, %v729, %v731
        %v733 = vsel %vm721, %v711, %v714
        %v734 = vsel %vm724, %v720, 1326507024
        %v735 = vsel %vm723, %v717, %v734
        %v736 = vsel %vm722, %v733, %v735
        %v737 = vshll.u32 %v697, 8
        %v738 = vmul.u32.u64.compose %v737, %v736
        %v739 = vextract.low.u32 %v738
        %v740 = vextract.high.u32 %v738
        %v741 = vmul.u32.u64.compose %v737, %v732
        %v742 = vextract.low.u32 %v741
        %v743 = vextract.high.u32 %v741
        %v744 = vmul.u32 %v737, %v728
        %v745 = vadd.s32 %v740, %v742
        %vm746 = vc.u32 %v740, %v742
        %v747 = vadd.s32 %v743, 1
        %v748 = vsel %vm746, %v747, %v743
        %v749 = vadd.s32 %v744, %v748
        %v750 = vadd.s32 %v749, 536870912
        %v751 = vshrl.u32 %v750, 30
        %v752 = vshll.u32 %v751, 30
        %v753 = vsub.s32 %v749, %v752
        %vm754 = vcmp.lt.s32.totalorder %v753, 0
        %v755 = vsub.s32 0, %v753
        %v756 = vsel %vm754, %v755, %v753
        %v757 = vclz %v756
        %v758 = vsub.s32 %v757, 2
        %vm759 = vcmp.gt.s32.totalorder 0, %v758
        %v760 = vsel %vm759, 0, %v758
        %v761 = vsub.s32 32, %v760
        %v762 = vshll.u32 %v753, %v760
        %v763 = vshrl.u32 %v745, %v761
        %v764 = vor.u32 %v762, %v763
        %v765 = vsub.s32 4294967266, %v760
        %v766 = vadd.s32 %v765, 127
        %v767 = vshll.u32 %v766, 23
        %v768 = vor.u32 4788187, %v767
        %v769 = vand.u32 2147483647, %v768
        %v771 = vcvt.s32.f32 %v764
        %v772 = vmul.f32 %v771, %v769
        %v773 = vxor.u32 %v772, 2147483648
        %v774 = vsel %vm691, %v773, %v772
        %v775 = vsub.s32 4, %v751
        %v776 = vsel %vm691, %v775, %v751
        %v777 = vsel %vm690, %v583, %v774
        %v778 = vsel %vm690, 0, %v776
        %v779 = vcosq.f32.pop %v777
        %v780 = vsinq.f32.pop %v777
        %vm781 = vweird.f32 %v583
        %v782 = vadd.s32 %v778, 3
        %v783 = vand.u32 %v782, 3
        %vm784 = vcmp.lt.s32.totalorder %v783, 2
        %vm785 = vcmp.eq.s32.totalorder %v783, 0
        %v786 = vxor.u32 %v780, 2147483648
        %v787 = vsel %vm785, %v779, %v786
        %vm788 = vcmp.eq.s32.totalorder %v783, 2
        %v789 = vxor.u32 %v779, 2147483648
        %v790 = vsel %vm788, %v789, %v780
        %v791 = vsel %vm784, %v787, %v790
        %v792 = vsel %vm781, nan, %v791
        %v793 = vand.u32 2147483647, %v581
        %vm794 = vcmp.le.f32.partialorder %v793, 0.7853982
        %vm795 = vcmp.lt.s32.totalorder %v581, 0
        %v796 = vand.u32 %v581, 2139095040
        %v797 = vshrl.u32 %v796, 23
        %v798 = vsub.s32 %v797, 127
        %v799 = vand.u32 2147483647, %v581
        %v800 = vand.u32 %v799, 8388607
        %v801 = vor.u32 %v800, 8388608
        %v802 = vsub.s32 0, %v801
        %v803 = vadd.s32 %v798, 1
        %vm804 = vcmp.gt.s32.totalorder %v803, 0
        %v805 = vsel %vm804, %v803, 0
        %v806 = vshrl.u32 %v805, 5
        %v807 = vand.u32 %v805, 31
        %v808 = vsub.s32 32, %v807
        %v809 = vshrl.u32 683565275, %v808
        %v810 = vshll.u32 683565275, %v807
        %v811 = vshrl.u32 2475754826, %v808
        %v812 = vor.u32 %v810, %v811
        %v813 = vshll.u32 2475754826, %v807
        %v814 = vshrl.u32 2131351028, %v808
        %v815 = vor.u32 %v813, %v814
        %v816 = vshll.u32 2131351028, %v807
        %v817 = vshrl.u32 2102212464, %v808
        %v818 = vor.u32 %v816, %v817
        %v819 = vshll.u32 2102212464, %v807
        %v820 = vshrl.u32 920167782, %v808
        %v821 = vor.u32 %v819, %v820
        %v822 = vshll.u32 920167782, %v807
        %v823 = vshrl.u32 1326507024, %v808
        %v824 = vor.u32 %v822, %v823
        %vm825 = vcmp.lt.s32.totalorder %v806, 1
        %vm826 = vcmp.lt.s32.totalorder %v806, 2
        %vm827 = vcmp.lt.s32.totalorder %v806, 3
        %vm828 = vcmp.lt.s32.totalorder %v806, 4
        %v829 = vsel %vm825, %v809, %v812
        %v830 = vsel %vm828, %v818, 2102212464
        %v831 = vsel %vm827, %v815, %v830
        %v832 = vsel %vm826, %v829, %v831
        %v833 = vsel %vm825, %v812, %v815
        %v834 = vsel %vm828, %v821, 920167782
        %v835 = vsel %vm827, %v818, %v834
        %v836 = vsel %vm826, %v833, %v835
        %v837 = vsel %vm825, %v815, %v818
        %v838 = vsel %vm828, %v824, 1326507024
        %v839 = vsel %vm827, %v821, %v838
        %v840 = vsel %vm826, %v837, %v839
        %v841 = vshll.u32 %v801, 8
        %v842 = vmul.u32.u64.compose %v841, %v840
        %v843 = vextract.low.u32 %v842
        %v844 = vextract.high.u32 %v842
        %v845 = vmul.u32.u64.compose %v841, %v836
        %v846 = vextract.low.u32 %v845
        %v847 = vextract.high.u32 %v845
        %v848 = vmul.u32 %v841, %v832
        %v849 = vadd.s32 %v844, %v846
        %vm850 = vc.u32 %v844, %v846
        %v851 = vadd.s32 %v847, 1
        %v852 = vsel %vm850, %v851, %v847
        %v853 = vadd.s32 %v848, %v852
        %v854 = vadd.s32 %v853, 536870912
        %v855 = vshrl.u32 %v854, 30
        %v856 = vshll.u32 %v855, 30
        %v857 = vsub.s32 %v853, %v856
        %vm858 = vcmp.lt.s32.totalorder %v857, 0
        %v859 = vsub.s32 0, %v857
        %v860 = vsel %vm858, %v859, %v857
        %v861 = vclz %v860
        %v862 = vsub.s32 %v861, 2
        %vm863 = vcmp.gt.s32.totalorder 0, %v862
        %v864 = vsel %vm863, 0, %v862
        %v865 = vsub.s32 32, %v864
        %v866 = vshll.u32 %v857, %v864
        %v867 = vshrl.u32 %v849, %v865
        %v868 = vor.u32 %v866, %v867
        %v869 = vsub.s32 4294967266, %v864
        %v870 = vadd.s32 %v869, 127
        %v871 = vshll.u32 %v870, 23
        %v872 = vor.u32 4788187, %v871
        %v873 = vand.u32 2147483647, %v872
        %v875 = vcvt.s32.f32 %v868
        %v876 = vmul.f32 %v875, %v873
        %v877 = vxor.u32 %v876, 2147483648
        %v878 = vsel %vm795, %v877, %v876
        %v879 = vsub.s32 4, %v855
        %v880 = vsel %vm795, %v879, %v855
        %v881 = vsel %vm794, %v581, %v878
        %v882 = vsel %vm794, 0, %v880
        %v883 = vcosq.f32.pop %v881
        %v884 = vsinq.f32.pop %v881
        %vm885 = vweird.f32 %v581
        %v886 = vand.u32 %v882, 3
        %vm887 = vcmp.lt.s32.totalorder %v886, 2
        %vm888 = vcmp.eq.s32.totalorder %v886, 0
        %v889 = vxor.u32 %v884, 2147483648
        %v890 = vsel %vm888, %v883, %v889
        %vm891 = vcmp.eq.s32.totalorder %v886, 2
        %v892 = vxor.u32 %v883, 2147483648
        %v893 = vsel %vm891, %v892, %v884
        %v894 = vsel %vm887, %v890, %v893
        %v895 = vsel %vm885, nan, %v894
        %v896 = vand.u32 2147483647, %v583
        %vm897 = vcmp.le.f32.partialorder %v896, 0.7853982
        %vm898 = vcmp.lt.s32.totalorder %v583, 0
        %v899 = vand.u32 %v583, 2139095040
        %v900 = vshrl.u32 %v899, 23
        %v901 = vsub.s32 %v900, 127
        %v902 = vand.u32 2147483647, %v583
        %v903 = vand.u32 %v902, 8388607
        %v904 = vor.u32 %v903, 8388608
        %v905 = vsub.s32 0, %v904
        %v906 = vadd.s32 %v901, 1
        %vm907 = vcmp.gt.s32.totalorder %v906, 0
        %v908 = vsel %vm907, %v906, 0
        %v909 = vshrl.u32 %v908, 5
        %v910 = vand.u32 %v908, 31
        %v911 = vsub.s32 32, %v910
        %v912 = vshrl.u32 683565275, %v911
        %v913 = vshll.u32 683565275, %v910
        %v914 = vshrl.u32 2475754826, %v911
        %v915 = vor.u32 %v913, %v914
        %v916 = vshll.u32 2475754826, %v910
        %v917 = vshrl.u32 2131351028, %v911
        %v918 = vor.u32 %v916, %v917
        %v919 = vshll.u32 2131351028, %v910
        %v920 = vshrl.u32 2102212464, %v911
        %v921 = vor.u32 %v919, %v920
        %v922 = vshll.u32 2102212464, %v910
        %v923 = vshrl.u32 920167782, %v911
        %v924 = vor.u32 %v922, %v923
        %v925 = vshll.u32 920167782, %v910
        %v926 = vshrl.u32 1326507024, %v911
        %v927 = vor.u32 %v925, %v926
        %vm928 = vcmp.lt.s32.totalorder %v909, 1
        %vm929 = vcmp.lt.s32.totalorder %v909, 2
        %vm930 = vcmp.lt.s32.totalorder %v909, 3
        %vm931 = vcmp.lt.s32.totalorder %v909, 4
        %v932 = vsel %vm928, %v912, %v915
        %v933 = vsel %vm931, %v921, 2102212464
        %v934 = vsel %vm930, %v918, %v933
        %v935 = vsel %vm929, %v932, %v934
        %v936 = vsel %vm928, %v915, %v918
        %v937 = vsel %vm931, %v924, 920167782
        %v938 = vsel %vm930, %v921, %v937
        %v939 = vsel %vm929, %v936, %v938
        %v940 = vsel %vm928, %v918, %v921
        %v941 = vsel %vm931, %v927, 1326507024
        %v942 = vsel %vm930, %v924, %v941
        %v943 = vsel %vm929, %v940, %v942
        %v944 = vshll.u32 %v904, 8
        %v945 = vmul.u32.u64.compose %v944, %v943
        %v946 = vextract.low.u32 %v945
        %v947 = vextract.high.u32 %v945
        %v948 = vmul.u32.u64.compose %v944, %v939
        %v949 = vextract.low.u32 %v948
        %v950 = vextract.high.u32 %v948
        %v951 = vmul.u32 %v944, %v935
        %v952 = vadd.s32 %v947, %v949
        %vm953 = vc.u32 %v947, %v949
        %v954 = vadd.s32 %v950, 1
        %v955 = vsel %vm953, %v954, %v950
        %v956 = vadd.s32 %v951, %v955
        %v957 = vadd.s32 %v956, 536870912
        %v958 = vshrl.u32 %v957, 30
        %v959 = vshll.u32 %v958, 30
        %v960 = vsub.s32 %v956, %v959
        %vm961 = vcmp.lt.s32.totalorder %v960, 0
        %v962 = vsub.s32 0, %v960
        %v963 = vsel %vm961, %v962, %v960
        %v964 = vclz %v963
        %v965 = vsub.s32 %v964, 2
        %vm966 = vcmp.gt.s32.totalorder 0, %v965
        %v967 = vsel %vm966, 0, %v965
        %v968 = vsub.s32 32, %v967
        %v969 = vshll.u32 %v960, %v967
        %v970 = vshrl.u32 %v952, %v968
        %v971 = vor.u32 %v969, %v970
        %v972 = vsub.s32 4294967266, %v967
        %v973 = vadd.s32 %v972, 127
        %v974 = vshll.u32 %v973, 23
        %v975 = vor.u32 4788187, %v974
        %v976 = vand.u32 2147483647, %v975
        %v978 = vcvt.s32.f32 %v971
        %v979 = vmul.f32 %v978, %v976
        %v980 = vxor.u32 %v979, 2147483648
        %v981 = vsel %vm898, %v980, %v979
        %v982 = vsub.s32 4, %v958
        %v983 = vsel %vm898, %v982, %v958
        %v984 = vsel %vm897, %v583, %v981
        %v985 = vsel %vm897, 0, %v983
        %v986 = vcosq.f32.pop %v984
        %v987 = vsinq.f32.pop %v984
        %vm988 = vweird.f32 %v583
        %v989 = vand.u32 %v985, 3
        %vm990 = vcmp.lt.s32.totalorder %v989, 2
        %vm991 = vcmp.eq.s32.totalorder %v989, 0
        %v992 = vxor.u32 %v987, 2147483648
        %v993 = vsel %vm991, %v986, %v992
        %vm994 = vcmp.eq.s32.totalorder %v989, 2
        %v995 = vxor.u32 %v986, 2147483648
        %v996 = vsel %vm994, %v995, %v987
        %v997 = vsel %vm990, %v993, %v996
        %v998 = vsel %vm988, nan, %v997
        %v999 = vld [vmem:[%s2] sm:$0xff]
        %v1000 = vld [vmem:[%s2 + $0x8] sm:$0xff]
        %v1001 = vld [vmem:[%s2 + $0x10] sm:$0xff]
        %v1002 = vld [vmem:[%s2 + $0x18] sm:$0xff]
        %v1003 = vld [vmem:[%s5] sm:$0xff]
        %v1004 = vld [vmem:[%s5 + $0x8] sm:$0xff]
        %v1005 = vld [vmem:[%s5 + $0x10] sm:$0xff]
        %v1006 = vld [vmem:[%s5 + $0x18] sm:$0xff]
        %1008 = vset.pattern.permute.xlu0 0
        %1009 = vperm.xlu0 %1008, %v1003
        %v1010 = vpop.permute.xlu0 %1009
        %1013 = vset.pattern.permute.xlu0 0
        %1014 = vperm.xlu0 %1013, %v1004
        %v1015 = vpop.permute.xlu0 %1014
        %1018 = vset.pattern.permute.xlu0 0
        %1019 = vperm.xlu0 %1018, %v1005
        %v1020 = vpop.permute.xlu0 %1019
        %1023 = vset.pattern.permute.xlu0 0
        %1024 = vperm.xlu0 %1023, %v1006
        %v1025 = vpop.permute.xlu0 %1024
        %v1028 = vsel %vm414, %v999, 0
        %v1031 = vsel %vm414, %v1000, 0
        %v1034 = vsel %vm414, %v1001, 0
        %v1037 = vsel %vm414, %v1002, 0
        %1039 = vmatprep.subr.mxu0 0.0
        %1040 = vmatpush1.xpose.msra.mxu0 %v464
        %1041 = vmatprep.subr.mxu0 0.0
        %1042 = vmatpush1.xpose.msra.mxu0 %v461
        %1043 = vmatprep.subr.mxu0 0.0
        %1044 = vmatpush1.xpose.msra.mxu0 %v458
        %1045 = vmatprep.subr.mxu0 0.0
        %1046 = vmatpush1.xpose.msra.mxu0 %v455
        %1047 = vmatprep.subr.mxu0 0.0
        %1048 = vmatpush1.xpose.msra.mxu0 %v452
        %1049 = vmatprep.subr.mxu0 0.0
        %1050 = vmatpush1.xpose.msra.mxu0 %v449
        %1051 = vmatprep.subr.mxu0 0.0
        %1052 = vmatpush1.xpose.msra.mxu0 %v446
        %1053 = vmatprep.subr.mxu0 0.0
        %1054 = vmatpush1.xpose.msra.mxu0 %v443
        %1055 = vmatprep.subr.mxu0 0.0
        %1056 = vmatpush1.xpose.msra.mxu0 %v440
        %1057 = vmatprep.subr.mxu0 0.0
        %1058 = vmatpush1.xpose.msra.mxu0 %v437
        %1059 = vmatprep.subr.mxu0 0.0
        %1060 = vmatpush1.xpose.msra.mxu0 %v434
        %1061 = vmatprep.subr.mxu0 0.0
        %1062 = vmatpush1.xpose.msra.mxu0 %v431
        %1063 = vmatprep.subr.mxu0 0.0
        %1064 = vmatpush1.xpose.msra.mxu0 %v428
        %1065 = vmatprep.subr.mxu0 0.0
        %1066 = vmatpush1.xpose.msra.mxu0 %v425
        %1067 = vmatprep.subr.mxu0 0.0
        %1068 = vmatpush1.xpose.msra.mxu0 %v422
        %1069 = vmatprep.subr.mxu0 0.0
        %1070 = vmatpush1.xpose.msra.mxu0 %v419
        %1071 = vmatprep.subr.mxu0 0.0
        %1072 = vmatpush2.xpose.msra.mxu0 %v512
        %1073 = vmatprep.subr.mxu0 0.0
        %1074 = vmatpush2.xpose.msra.mxu0 %v509
        %1075 = vmatprep.subr.mxu0 0.0
        %1076 = vmatpush2.xpose.msra.mxu0 %v506
        %1077 = vmatprep.subr.mxu0 0.0
        %1078 = vmatpush2.xpose.msra.mxu0 %v503
        %1079 = vmatprep.subr.mxu0 0.0
        %1080 = vmatpush2.xpose.msra.mxu0 %v500
        %1081 = vmatprep.subr.mxu0 0.0
        %1082 = vmatpush2.xpose.msra.mxu0 %v497
        %1083 = vmatprep.subr.mxu0 0.0
        %1084 = vmatpush2.xpose.msra.mxu0 %v494
        %1085 = vmatprep.subr.mxu0 0.0
        %1086 = vmatpush2.xpose.msra.mxu0 %v491
        %1087 = vmatprep.subr.mxu0 0.0
        %1088 = vmatpush2.xpose.msra.mxu0 %v488
        %1089 = vmatprep.subr.mxu0 0.0
        %1090 = vmatpush2.xpose.msra.mxu0 %v485
        %1091 = vmatprep.subr.mxu0 0.0
        %1092 = vmatpush2.xpose.msra.mxu0 %v482
        %1093 = vmatprep.subr.mxu0 0.0
        %1094 = vmatpush2.xpose.msra.mxu0 %v479
        %1095 = vmatprep.subr.mxu0 0.0
        %1096 = vmatpush2.xpose.msra.mxu0 %v476
        %1097 = vmatprep.subr.mxu0 0.0
        %1098 = vmatpush2.xpose.msra.mxu0 %v473
        %1099 = vmatprep.subr.mxu0 0.0
        %1100 = vmatpush2.xpose.msra.mxu0 %v470
        %1101 = vmatprep.subr.mxu0 0.0
        %1102 = vmatpush2.xpose.msra.mxu0 %v467
        %1103 = vmatprep.mubr.f32.mxu0 0.0
        %1104 = vmatmul.mubr.f32.gmra.mxu0 %v1028
        %v1105 = vpop.f32.mrf.mxu0
        %v1106 = vadd.f32 %v1010, %v1105
        %v1107 = vpop.f32.mrf.mxu0
        %v1108 = vadd.f32 %v1010, %v1107
        %1109 = vmatprep.mubr.f32.mxu0 0.0
        %1110 = vmatmul.mubr.f32.gmra.mxu0 %v1031
        %v1111 = vpop.f32.mrf.mxu0
        %v1112 = vadd.f32 %v1015, %v1111
        %v1113 = vpop.f32.mrf.mxu0
        %v1114 = vadd.f32 %v1015, %v1113
        %1115 = vmatprep.mubr.f32.mxu0 0.0
        %1116 = vmatmul.mubr.f32.gmra.mxu0 %v1034
        %v1117 = vpop.f32.mrf.mxu0
        %v1118 = vadd.f32 %v1020, %v1117
        %v1119 = vpop.f32.mrf.mxu0
        %v1120 = vadd.f32 %v1020, %v1119
        %1121 = vmatprep.mubr.f32.mxu0 0.0
        %1122 = vmatmul.mubr.f32.gmra.mxu0 %v1037
        %v1123 = vpop.f32.mrf.mxu0
        %v1124 = vadd.f32 %v1025, %v1123
        %v1125 = vpop.f32.mrf.mxu0
        %v1126 = vadd.f32 %v1025, %v1125
        %1127 = vdwg.mxu0
        %v1128 = vld [vmem:[%s3] sm:$0xff]
        %v1129 = vld [vmem:[%s3 + $0x8] sm:$0xff]
        %v1130 = vld [vmem:[%s3 + $0x10] sm:$0xff]
        %v1131 = vld [vmem:[%s3 + $0x18] sm:$0xff]
        %v1133 = vsel %vm414, %v1128, 0
        %v1136 = vsel %vm414, %v1129, 0
        %v1139 = vsel %vm414, %v1130, 0
        %v1142 = vsel %vm414, %v1131, 0
        %vm1144 = vcmask 1042432
        %v1146 = vsel %vm1144, %v688, 0
        %v1149 = vsel %vm1144, %v792, 0
        %1151 = vmatprep.subr.mxu0 0.0
        %1152 = vmatpush1.msra.mxu0 0.0
        %1153 = vmatprep.subr.mxu0 0.0
        %1154 = vmatpush1.msra.mxu0 0.0
        %1155 = vmatprep.subr.mxu0 0.0
        %1156 = vmatpush1.msra.mxu0 0.0
        %1157 = vmatprep.subr.mxu0 0.0
        %1158 = vmatpush1.msra.mxu0 0.0
        %1159 = vmatprep.subr.mxu0 0.0
        %1160 = vmatpush1.msra.mxu0 0.0
        %1161 = vmatprep.subr.mxu0 0.0
        %1162 = vmatpush1.msra.mxu0 0.0
        %1163 = vmatprep.subr.mxu0 0.0
        %1164 = vmatpush1.msra.mxu0 0.0
        %1165 = vmatprep.subr.mxu0 0.0
        %1166 = vmatpush1.msra.mxu0 0.0
        %1167 = vmatprep.subr.mxu0 0.0
        %1168 = vmatpush1.msra.mxu0 0.0
        %1169 = vmatprep.subr.mxu0 0.0
        %1170 = vmatpush1.msra.mxu0 0.0
        %1171 = vmatprep.subr.mxu0 0.0
        %1172 = vmatpush1.msra.mxu0 0.0
        %1173 = vmatprep.subr.mxu0 0.0
        %1174 = vmatpush1.msra.mxu0 0.0
        %1175 = vmatprep.subr.mxu0 0.0
        %1176 = vmatpush1.msra.mxu0 0.0
        %1177 = vmatprep.subr.mxu0 0.0
        %1178 = vmatpush1.msra.mxu0 0.0
        %1179 = vmatprep.subr.mxu0 0.0
        %1180 = vmatpush1.msra.mxu0 0.0
        %1181 = vmatprep.subr.mxu0 %v1149
        %1182 = vmatpush1.msra.mxu0 %v1146
        %1183 = vmatprep.subr.mxu0 0.0
        %1184 = vmatpush2.msra.mxu0 0.0
        %1185 = vmatprep.subr.mxu0 0.0
        %1186 = vmatpush2.msra.mxu0 0.0
        %1187 = vmatprep.subr.mxu0 0.0
        %1188 = vmatpush2.msra.mxu0 0.0
        %1189 = vmatprep.subr.mxu0 0.0
        %1190 = vmatpush2.msra.mxu0 0.0
        %1191 = vmatprep.subr.mxu0 0.0
        %1192 = vmatpush2.msra.mxu0 0.0
        %1193 = vmatprep.subr.mxu0 0.0
        %1194 = vmatpush2.msra.mxu0 0.0
        %1195 = vmatprep.subr.mxu0 0.0
        %1196 = vmatpush2.msra.mxu0 0.0
        %1197 = vmatprep.subr.mxu0 0.0
        %1198 = vmatpush2.msra.mxu0 0.0
        %1199 = vmatprep.subr.mxu0 0.0
        %1200 = vmatpush2.msra.mxu0 0.0
        %1201 = vmatprep.subr.mxu0 0.0
        %1202 = vmatpush2.msra.mxu0 0.0
        %1203 = vmatprep.subr.mxu0 0.0
        %1204 = vmatpush2.msra.mxu0 0.0
        %1205 = vmatprep.subr.mxu0 0.0
        %1206 = vmatpush2.msra.mxu0 0.0
        %1207 = vmatprep.subr.mxu0 0.0
        %1208 = vmatpush2.msra.mxu0 0.0
        %1209 = vmatprep.subr.mxu0 0.0
        %1210 = vmatpush2.msra.mxu0 0.0
        %1211 = vmatprep.subr.mxu0 0.0
        %1212 = vmatpush2.msra.mxu0 0.0
        %1213 = vmatprep.subr.mxu0 0.0
        %1214 = vmatpush2.msra.mxu0 0.0
        %1215 = vmatprep.mubr.f32.mxu0 0.0
        %1216 = vmatmul.mubr.f32.gmra.mxu0 %v1133
        %v1217 = vpop.f32.mrf.mxu0
        %v1218 = vadd.f32 0.0, %v1217
        %v1219 = vpop.f32.mrf.mxu0
        %v1220 = vadd.f32 0.0, %v1219
        %1221 = vmatprep.mubr.f32.mxu0 0.0
        %1222 = vmatmul.mubr.f32.gmra.mxu0 %v1136
        %v1223 = vpop.f32.mrf.mxu0
        %v1224 = vadd.f32 0.0, %v1223
        %v1225 = vpop.f32.mrf.mxu0
        %v1226 = vadd.f32 0.0, %v1225
        %1227 = vmatprep.mubr.f32.mxu0 0.0
        %1228 = vmatmul.mubr.f32.gmra.mxu0 %v1139
        %v1229 = vpop.f32.mrf.mxu0
        %v1230 = vadd.f32 0.0, %v1229
        %v1231 = vpop.f32.mrf.mxu0
        %v1232 = vadd.f32 0.0, %v1231
        %1233 = vmatprep.mubr.f32.mxu0 0.0
        %1234 = vmatmul.mubr.f32.gmra.mxu0 %v1142
        %v1235 = vpop.f32.mrf.mxu0
        %v1236 = vadd.f32 0.0, %v1235
        %v1237 = vpop.f32.mrf.mxu0
        %v1238 = vadd.f32 0.0, %v1237
        %1239 = vdwg.mxu0
        %v1240 = vadd.f32 %v1106, %v1218
        %v1241 = vadd.f32 %v1108, %v1220
        %v1242 = vadd.f32 %v1112, %v1224
        %v1243 = vadd.f32 %v1114, %v1226
        %v1244 = vadd.f32 %v1118, %v1230
        %v1245 = vadd.f32 %v1120, %v1232
        %v1246 = vadd.f32 %v1124, %v1236
        %v1247 = vadd.f32 %v1126, %v1238
        %v1248 = vld [vmem:[%s4] sm:$0xff]
        %v1249 = vld [vmem:[%s4 + $0x8] sm:$0xff]
        %v1250 = vld [vmem:[%s4 + $0x10] sm:$0xff]
        %v1251 = vld [vmem:[%s4 + $0x18] sm:$0xff]
        %v1253 = vsel %vm414, %v1248, 0
        %v1256 = vsel %vm414, %v1249, 0
        %v1259 = vsel %vm414, %v1250, 0
        %v1262 = vsel %vm414, %v1251, 0
        %v1265 = vsel %vm1144, %v895, 0
        %v1268 = vsel %vm1144, %v998, 0
        %1270 = vmatprep.subr.mxu0 0.0
        %1271 = vmatpush1.msra.mxu0 0.0
        %1272 = vmatprep.subr.mxu0 0.0
        %1273 = vmatpush1.msra.mxu0 0.0
        %1274 = vmatprep.subr.mxu0 0.0
        %1275 = vmatpush1.msra.mxu0 0.0
        %1276 = vmatprep.subr.mxu0 0.0
        %1277 = vmatpush1.msra.mxu0 0.0
        %1278 = vmatprep.subr.mxu0 0.0
        %1279 = vmatpush1.msra.mxu0 0.0
        %1280 = vmatprep.subr.mxu0 0.0
        %1281 = vmatpush1.msra.mxu0 0.0
        %1282 = vmatprep.subr.mxu0 0.0
        %1283 = vmatpush1.msra.mxu0 0.0
        %1284 = vmatprep.subr.mxu0 0.0
        %1285 = vmatpush1.msra.mxu0 0.0
        %1286 = vmatprep.subr.mxu0 0.0
        %1287 = vmatpush1.msra.mxu0 0.0
        %1288 = vmatprep.subr.mxu0 0.0
        %1289 = vmatpush1.msra.mxu0 0.0
        %1290 = vmatprep.subr.mxu0 0.0
        %1291 = vmatpush1.msra.mxu0 0.0
        %1292 = vmatprep.subr.mxu0 0.0
        %1293 = vmatpush1.msra.mxu0 0.0
        %1294 = vmatprep.subr.mxu0 0.0
        %1295 = vmatpush1.msra.mxu0 0.0
        %1296 = vmatprep.subr.mxu0 0.0
        %1297 = vmatpush1.msra.mxu0 0.0
        %1298 = vmatprep.subr.mxu0 0.0
        %1299 = vmatpush1.msra.mxu0 0.0
        %1300 = vmatprep.subr.mxu0 %v1268
        %1301 = vmatpush1.msra.mxu0 %v1265
        %1302 = vmatprep.subr.mxu0 0.0
        %1303 = vmatpush2.msra.mxu0 0.0
        %1304 = vmatprep.subr.mxu0 0.0
        %1305 = vmatpush2.msra.mxu0 0.0
        %1306 = vmatprep.subr.mxu0 0.0
        %1307 = vmatpush2.msra.mxu0 0.0
        %1308 = vmatprep.subr.mxu0 0.0
        %1309 = vmatpush2.msra.mxu0 0.0
        %1310 = vmatprep.subr.mxu0 0.0
        %1311 = vmatpush2.msra.mxu0 0.0
        %1312 = vmatprep.subr.mxu0 0.0
        %1313 = vmatpush2.msra.mxu0 0.0
        %1314 = vmatprep.subr.mxu0 0.0
        %1315 = vmatpush2.msra.mxu0 0.0
        %1316 = vmatprep.subr.mxu0 0.0
        %1317 = vmatpush2.msra.mxu0 0.0
        %1318 = vmatprep.subr.mxu0 0.0
        %1319 = vmatpush2.msra.mxu0 0.0
        %1320 = vmatprep.subr.mxu0 0.0
        %1321 = vmatpush2.msra.mxu0 0.0
        %1322 = vmatprep.subr.mxu0 0.0
        %1323 = vmatpush2.msra.mxu0 0.0
        %1324 = vmatprep.subr.mxu0 0.0
        %1325 = vmatpush2.msra.mxu0 0.0
        %1326 = vmatprep.subr.mxu0 0.0
        %1327 = vmatpush2.msra.mxu0 0.0
        %1328 = vmatprep.subr.mxu0 0.0
        %1329 = vmatpush2.msra.mxu0 0.0
        %1330 = vmatprep.subr.mxu0 0.0
        %1331 = vmatpush2.msra.mxu0 0.0
        %1332 = vmatprep.subr.mxu0 0.0
        %1333 = vmatpush2.msra.mxu0 0.0
        %1334 = vmatprep.mubr.f32.mxu0 0.0
        %1335 = vmatmul.mubr.f32.gmra.mxu0 %v1253
        %v1336 = vpop.f32.mrf.mxu0
        %v1337 = vadd.f32 0.0, %v1336
        %v1338 = vpop.f32.mrf.mxu0
        %v1339 = vadd.f32 0.0, %v1338
        %1340 = vmatprep.mubr.f32.mxu0 0.0
        %1341 = vmatmul.mubr.f32.gmra.mxu0 %v1256
        %v1342 = vpop.f32.mrf.mxu0
        %v1343 = vadd.f32 0.0, %v1342
        %v1344 = vpop.f32.mrf.mxu0
        %v1345 = vadd.f32 0.0, %v1344
        %1346 = vmatprep.mubr.f32.mxu0 0.0
        %1347 = vmatmul.mubr.f32.gmra.mxu0 %v1259
        %v1348 = vpop.f32.mrf.mxu0
        %v1349 = vadd.f32 0.0, %v1348
        %v1350 = vpop.f32.mrf.mxu0
        %v1351 = vadd.f32 0.0, %v1350
        %1352 = vmatprep.mubr.f32.mxu0 0.0
        %1353 = vmatmul.mubr.f32.gmra.mxu0 %v1262
        %v1354 = vpop.f32.mrf.mxu0
        %v1355 = vadd.f32 0.0, %v1354
        %v1356 = vpop.f32.mrf.mxu0
        %v1357 = vadd.f32 0.0, %v1356
        %1358 = vdwg.mxu0
        %v1359 = vadd.f32 %v1240, %v1337
        %v1360 = vadd.f32 %v1241, %v1339
        %v1361 = vadd.f32 %v1242, %v1343
        %v1362 = vadd.f32 %v1243, %v1345
        %v1363 = vadd.f32 %v1244, %v1349
        %v1364 = vadd.f32 %v1245, %v1351
        %v1365 = vadd.f32 %v1246, %v1355
        %v1366 = vadd.f32 %v1247, %v1357
        %v1367 = vmul.f32 %v688, %v895
        %v1368 = vmul.f32 %v792, %v998
        %v1369 = vmul.f32 %v1367, 2.0
        %v1370 = vmul.f32 %v1368, 2.0
        %v1371 = vmul.f32 %v688, %v688
        %v1372 = vmul.f32 %v792, %v792
        %v1373 = vmul.f32 %v1371, 2.0
        %v1374 = vmul.f32 %v1372, 2.0
        %v1375 = vsub.f32 1.0, %v1373
        %v1376 = vsub.f32 1.0, %v1374
        %s1377 = scalar_lea.vmem %s3, 32
        %v1378 = vld [vmem:[%s1377] sm:$0xff]
        %v1379 = vld [vmem:[%s1377 + $0x8] sm:$0xff]
        %v1380 = vld [vmem:[%s1377 + $0x10] sm:$0xff]
        %v1381 = vld [vmem:[%s1377 + $0x18] sm:$0xff]
        %v1383 = vsel %vm414, %v1378, 0
        %v1386 = vsel %vm414, %v1379, 0
        %v1389 = vsel %vm414, %v1380, 0
        %v1392 = vsel %vm414, %v1381, 0
        %v1395 = vsel %vm1144, %v1369, 0
        %v1398 = vsel %vm1144, %v1370, 0
        %1400 = vmatprep.subr.mxu0 0.0
        %1401 = vmatpush1.msra.mxu0 0.0
        %1402 = vmatprep.subr.mxu0 0.0
        %1403 = vmatpush1.msra.mxu0 0.0
        %1404 = vmatprep.subr.mxu0 0.0
        %1405 = vmatpush1.msra.mxu0 0.0
        %1406 = vmatprep.subr.mxu0 0.0
        %1407 = vmatpush1.msra.mxu0 0.0
        %1408 = vmatprep.subr.mxu0 0.0
        %1409 = vmatpush1.msra.mxu0 0.0
        %1410 = vmatprep.subr.mxu0 0.0
        %1411 = vmatpush1.msra.mxu0 0.0
        %1412 = vmatprep.subr.mxu0 0.0
        %1413 = vmatpush1.msra.mxu0 0.0
        %1414 = vmatprep.subr.mxu0 0.0
        %1415 = vmatpush1.msra.mxu0 0.0
        %1416 = vmatprep.subr.mxu0 0.0
        %1417 = vmatpush1.msra.mxu0 0.0
        %1418 = vmatprep.subr.mxu0 0.0
        %1419 = vmatpush1.msra.mxu0 0.0
        %1420 = vmatprep.subr.mxu0 0.0
        %1421 = vmatpush1.msra.mxu0 0.0
        %1422 = vmatprep.subr.mxu0 0.0
        %1423 = vmatpush1.msra.mxu0 0.0
        %1424 = vmatprep.subr.mxu0 0.0
        %1425 = vmatpush1.msra.mxu0 0.0
        %1426 = vmatprep.subr.mxu0 0.0
        %1427 = vmatpush1.msra.mxu0 0.0
        %1428 = vmatprep.subr.mxu0 0.0
        %1429 = vmatpush1.msra.mxu0 0.0
        %1430 = vmatprep.subr.mxu0 %v1398
        %1431 = vmatpush1.msra.mxu0 %v1395
        %1432 = vmatprep.subr.mxu0 0.0
        %1433 = vmatpush2.msra.mxu0 0.0
        %1434 = vmatprep.subr.mxu0 0.0
        %1435 = vmatpush2.msra.mxu0 0.0
        %1436 = vmatprep.subr.mxu0 0.0
        %1437 = vmatpush2.msra.mxu0 0.0
        %1438 = vmatprep.subr.mxu0 0.0
        %1439 = vmatpush2.msra.mxu0 0.0
        %1440 = vmatprep.subr.mxu0 0.0
        %1441 = vmatpush2.msra.mxu0 0.0
        %1442 = vmatprep.subr.mxu0 0.0
        %1443 = vmatpush2.msra.mxu0 0.0
        %1444 = vmatprep.subr.mxu0 0.0
        %1445 = vmatpush2.msra.mxu0 0.0
        %1446 = vmatprep.subr.mxu0 0.0
        %1447 = vmatpush2.msra.mxu0 0.0
        %1448 = vmatprep.subr.mxu0 0.0
        %1449 = vmatpush2.msra.mxu0 0.0
        %1450 = vmatprep.subr.mxu0 0.0
        %1451 = vmatpush2.msra.mxu0 0.0
        %1452 = vmatprep.subr.mxu0 0.0
        %1453 = vmatpush2.msra.mxu0 0.0
        %1454 = vmatprep.subr.mxu0 0.0
        %1455 = vmatpush2.msra.mxu0 0.0
        %1456 = vmatprep.subr.mxu0 0.0
        %1457 = vmatpush2.msra.mxu0 0.0
        %1458 = vmatprep.subr.mxu0 0.0
        %1459 = vmatpush2.msra.mxu0 0.0
        %1460 = vmatprep.subr.mxu0 0.0
        %1461 = vmatpush2.msra.mxu0 0.0
        %1462 = vmatprep.subr.mxu0 0.0
        %1463 = vmatpush2.msra.mxu0 0.0
        %1464 = vmatprep.mubr.f32.mxu0 0.0
        %1465 = vmatmul.mubr.f32.gmra.mxu0 %v1383
        %v1466 = vpop.f32.mrf.mxu0
        %v1467 = vadd.f32 0.0, %v1466
        %v1468 = vpop.f32.mrf.mxu0
        %v1469 = vadd.f32 0.0, %v1468
        %1470 = vmatprep.mubr.f32.mxu0 0.0
        %1471 = vmatmul.mubr.f32.gmra.mxu0 %v1386
        %v1472 = vpop.f32.mrf.mxu0
        %v1473 = vadd.f32 0.0, %v1472
        %v1474 = vpop.f32.mrf.mxu0
        %v1475 = vadd.f32 0.0, %v1474
        %1476 = vmatprep.mubr.f32.mxu0 0.0
        %1477 = vmatmul.mubr.f32.gmra.mxu0 %v1389
        %v1478 = vpop.f32.mrf.mxu0
        %v1479 = vadd.f32 0.0, %v1478
        %v1480 = vpop.f32.mrf.mxu0
        %v1481 = vadd.f32 0.0, %v1480
        %1482 = vmatprep.mubr.f32.mxu0 0.0
        %1483 = vmatmul.mubr.f32.gmra.mxu0 %v1392
        %v1484 = vpop.f32.mrf.mxu0
        %v1485 = vadd.f32 0.0, %v1484
        %v1486 = vpop.f32.mrf.mxu0
        %v1487 = vadd.f32 0.0, %v1486
        %1488 = vdwg.mxu0
        %v1489 = vadd.f32 %v1359, %v1467
        %v1490 = vadd.f32 %v1360, %v1469
        %v1491 = vadd.f32 %v1361, %v1473
        %v1492 = vadd.f32 %v1362, %v1475
        %v1493 = vadd.f32 %v1363, %v1479
        %v1494 = vadd.f32 %v1364, %v1481
        %v1495 = vadd.f32 %v1365, %v1485
        %v1496 = vadd.f32 %v1366, %v1487
        %s1497 = scalar_lea.vmem %s4, 32
        %v1498 = vld [vmem:[%s1497] sm:$0xff]
        %v1499 = vld [vmem:[%s1497 + $0x8] sm:$0xff]
        %v1500 = vld [vmem:[%s1497 + $0x10] sm:$0xff]
        %v1501 = vld [vmem:[%s1497 + $0x18] sm:$0xff]
        %v1503 = vsel %vm414, %v1498, 0
        %v1506 = vsel %vm414, %v1499, 0
        %v1509 = vsel %vm414, %v1500, 0
        %v1512 = vsel %vm414, %v1501, 0
        %v1515 = vsel %vm1144, %v1375, 0
        %v1518 = vsel %vm1144, %v1376, 0
        %1520 = vmatprep.subr.mxu0 0.0
        %1521 = vmatpush1.msra.mxu0 0.0
        %1522 = vmatprep.subr.mxu0 0.0
        %1523 = vmatpush1.msra.mxu0 0.0
        %1524 = vmatprep.subr.mxu0 0.0
        %1525 = vmatpush1.msra.mxu0 0.0
        %1526 = vmatprep.subr.mxu0 0.0
        %1527 = vmatpush1.msra.mxu0 0.0
        %1528 = vmatprep.subr.mxu0 0.0
        %1529 = vmatpush1.msra.mxu0 0.0
        %1530 = vmatprep.subr.mxu0 0.0
        %1531 = vmatpush1.msra.mxu0 0.0
        %1532 = vmatprep.subr.mxu0 0.0
        %1533 = vmatpush1.msra.mxu0 0.0
        %1534 = vmatprep.subr.mxu0 0.0
        %1535 = vmatpush1.msra.mxu0 0.0
        %1536 = vmatprep.subr.mxu0 0.0
        %1537 = vmatpush1.msra.mxu0 0.0
        %1538 = vmatprep.subr.mxu0 0.0
        %1539 = vmatpush1.msra.mxu0 0.0
        %1540 = vmatprep.subr.mxu0 0.0
        %1541 = vmatpush1.msra.mxu0 0.0
        %1542 = vmatprep.subr.mxu0 0.0
        %1543 = vmatpush1.msra.mxu0 0.0
        %1544 = vmatprep.subr.mxu0 0.0
        %1545 = vmatpush1.msra.mxu0 0.0
        %1546 = vmatprep.subr.mxu0 0.0
        %1547 = vmatpush1.msra.mxu0 0.0
        %1548 = vmatprep.subr.mxu0 0.0
        %1549 = vmatpush1.msra.mxu0 0.0
        %1550 = vmatprep.subr.mxu0 %v1518
        %1551 = vmatpush1.msra.mxu0 %v1515
        %1552 = vmatprep.subr.mxu0 0.0
        %1553 = vmatpush2.msra.mxu0 0.0
        %1554 = vmatprep.subr.mxu0 0.0
        %1555 = vmatpush2.msra.mxu0 0.0
        %1556 = vmatprep.subr.mxu0 0.0
        %1557 = vmatpush2.msra.mxu0 0.0
        %1558 = vmatprep.subr.mxu0 0.0
        %1559 = vmatpush2.msra.mxu0 0.0
        %1560 = vmatprep.subr.mxu0 0.0
        %1561 = vmatpush2.msra.mxu0 0.0
        %1562 = vmatprep.subr.mxu0 0.0
        %1563 = vmatpush2.msra.mxu0 0.0
        %1564 = vmatprep.subr.mxu0 0.0
        %1565 = vmatpush2.msra.mxu0 0.0
        %1566 = vmatprep.subr.mxu0 0.0
        %1567 = vmatpush2.msra.mxu0 0.0
        %1568 = vmatprep.subr.mxu0 0.0
        %1569 = vmatpush2.msra.mxu0 0.0
        %1570 = vmatprep.subr.mxu0 0.0
        %1571 = vmatpush2.msra.mxu0 0.0
        %1572 = vmatprep.subr.mxu0 0.0
        %1573 = vmatpush2.msra.mxu0 0.0
        %1574 = vmatprep.subr.mxu0 0.0
        %1575 = vmatpush2.msra.mxu0 0.0
        %1576 = vmatprep.subr.mxu0 0.0
        %1577 = vmatpush2.msra.mxu0 0.0
        %1578 = vmatprep.subr.mxu0 0.0
        %1579 = vmatpush2.msra.mxu0 0.0
        %1580 = vmatprep.subr.mxu0 0.0
        %1581 = vmatpush2.msra.mxu0 0.0
        %1582 = vmatprep.subr.mxu0 0.0
        %1583 = vmatpush2.msra.mxu0 0.0
        %1584 = vmatprep.mubr.f32.mxu0 0.0
        %1585 = vmatmul.mubr.f32.gmra.mxu0 %v1503
        %v1586 = vpop.f32.mrf.mxu0
        %v1587 = vadd.f32 0.0, %v1586
        %v1588 = vpop.f32.mrf.mxu0
        %v1589 = vadd.f32 0.0, %v1588
        %1590 = vmatprep.mubr.f32.mxu0 0.0
        %1591 = vmatmul.mubr.f32.gmra.mxu0 %v1506
        %v1592 = vpop.f32.mrf.mxu0
        %v1593 = vadd.f32 0.0, %v1592
        %v1594 = vpop.f32.mrf.mxu0
        %v1595 = vadd.f32 0.0, %v1594
        %1596 = vmatprep.mubr.f32.mxu0 0.0
        %1597 = vmatmul.mubr.f32.gmra.mxu0 %v1509
        %v1598 = vpop.f32.mrf.mxu0
        %v1599 = vadd.f32 0.0, %v1598
        %v1600 = vpop.f32.mrf.mxu0
        %v1601 = vadd.f32 0.0, %v1600
        %1602 = vmatprep.mubr.f32.mxu0 0.0
        %1603 = vmatmul.mubr.f32.gmra.mxu0 %v1512
        %v1604 = vpop.f32.mrf.mxu0
        %v1605 = vadd.f32 0.0, %v1604
        %v1606 = vpop.f32.mrf.mxu0
        %v1607 = vadd.f32 0.0, %v1606
        %1608 = vdwg.mxu0
        %v1609 = vadd.f32 %v1489, %v1587
        %v1610 = vadd.f32 %v1490, %v1589
        %v1611 = vadd.f32 %v1491, %v1593
        %v1612 = vadd.f32 %v1492, %v1595
        %v1613 = vadd.f32 %v1493, %v1599
        %v1614 = vadd.f32 %v1494, %v1601
        %v1615 = vadd.f32 %v1495, %v1605
        %v1616 = vadd.f32 %v1496, %v1607
        %v1617 = vmul.f32 %v1369, %v1375
        %v1618 = vmul.f32 %v1370, %v1376
        %v1619 = vmul.f32 %v1617, 2.0
        %v1620 = vmul.f32 %v1618, 2.0
        %v1621 = vmul.f32 %v1369, %v1369
        %v1622 = vmul.f32 %v1370, %v1370
        %v1623 = vmul.f32 %v1621, 2.0
        %v1624 = vmul.f32 %v1622, 2.0
        %v1625 = vsub.f32 1.0, %v1623
        %v1626 = vsub.f32 1.0, %v1624
        %s1627 = scalar_lea.vmem %s3, 64
        %v1628 = vld [vmem:[%s1627] sm:$0xff]
        %v1629 = vld [vmem:[%s1627 + $0x8] sm:$0xff]
        %v1630 = vld [vmem:[%s1627 + $0x10] sm:$0xff]
        %v1631 = vld [vmem:[%s1627 + $0x18] sm:$0xff]
        %v1633 = vsel %vm414, %v1628, 0
        %v1636 = vsel %vm414, %v1629, 0
        %v1639 = vsel %vm414, %v1630, 0
        %v1642 = vsel %vm414, %v1631, 0
        %v1645 = vsel %vm1144, %v1619, 0
        %v1648 = vsel %vm1144, %v1620, 0
        %1650 = vmatprep.subr.mxu0 0.0
        %1651 = vmatpush1.msra.mxu0 0.0
        %1652 = vmatprep.subr.mxu0 0.0
        %1653 = vmatpush1.msra.mxu0 0.0
        %1654 = vmatprep.subr.mxu0 0.0
        %1655 = vmatpush1.msra.mxu0 0.0
        %1656 = vmatprep.subr.mxu0 0.0
        %1657 = vmatpush1.msra.mxu0 0.0
        %1658 = vmatprep.subr.mxu0 0.0
        %1659 = vmatpush1.msra.mxu0 0.0
        %1660 = vmatprep.subr.mxu0 0.0
        %1661 = vmatpush1.msra.mxu0 0.0
        %1662 = vmatprep.subr.mxu0 0.0
        %1663 = vmatpush1.msra.mxu0 0.0
        %1664 = vmatprep.subr.mxu0 0.0
        %1665 = vmatpush1.msra.mxu0 0.0
        %1666 = vmatprep.subr.mxu0 0.0
        %1667 = vmatpush1.msra.mxu0 0.0
        %1668 = vmatprep.subr.mxu0 0.0
        %1669 = vmatpush1.msra.mxu0 0.0
        %1670 = vmatprep.subr.mxu0 0.0
        %1671 = vmatpush1.msra.mxu0 0.0
        %1672 = vmatprep.subr.mxu0 0.0
        %1673 = vmatpush1.msra.mxu0 0.0
        %1674 = vmatprep.subr.mxu0 0.0
        %1675 = vmatpush1.msra.mxu0 0.0
        %1676 = vmatprep.subr.mxu0 0.0
        %1677 = vmatpush1.msra.mxu0 0.0
        %1678 = vmatprep.subr.mxu0 0.0
        %1679 = vmatpush1.msra.mxu0 0.0
        %1680 = vmatprep.subr.mxu0 %v1648
        %1681 = vmatpush1.msra.mxu0 %v1645
        %1682 = vmatprep.subr.mxu0 0.0
        %1683 = vmatpush2.msra.mxu0 0.0
        %1684 = vmatprep.subr.mxu0 0.0
        %1685 = vmatpush2.msra.mxu0 0.0
        %1686 = vmatprep.subr.mxu0 0.0
        %1687 = vmatpush2.msra.mxu0 0.0
        %1688 = vmatprep.subr.mxu0 0.0
        %1689 = vmatpush2.msra.mxu0 0.0
        %1690 = vmatprep.subr.mxu0 0.0
        %1691 = vmatpush2.msra.mxu0 0.0
        %1692 = vmatprep.subr.mxu0 0.0
        %1693 = vmatpush2.msra.mxu0 0.0
        %1694 = vmatprep.subr.mxu0 0.0
        %1695 = vmatpush2.msra.mxu0 0.0
        %1696 = vmatprep.subr.mxu0 0.0
        %1697 = vmatpush2.msra.mxu0 0.0
        %1698 = vmatprep.subr.mxu0 0.0
        %1699 = vmatpush2.msra.mxu0 0.0
        %1700 = vmatprep.subr.mxu0 0.0
        %1701 = vmatpush2.msra.mxu0 0.0
        %1702 = vmatprep.subr.mxu0 0.0
        %1703 = vmatpush2.msra.mxu0 0.0
        %1704 = vmatprep.subr.mxu0 0.0
        %1705 = vmatpush2.msra.mxu0 0.0
        %1706 = vmatprep.subr.mxu0 0.0
        %1707 = vmatpush2.msra.mxu0 0.0
        %1708 = vmatprep.subr.mxu0 0.0
        %1709 = vmatpush2.msra.mxu0 0.0
        %1710 = vmatprep.subr.mxu0 0.0
        %1711 = vmatpush2.msra.mxu0 0.0
        %1712 = vmatprep.subr.mxu0 0.0
        %1713 = vmatpush2.msra.mxu0 0.0
        %1714 = vmatprep.mubr.f32.mxu0 0.0
        %1715 = vmatmul.mubr.f32.gmra.mxu0 %v1633
        %v1716 = vpop.f32.mrf.mxu0
        %v1717 = vadd.f32 0.0, %v1716
        %v1718 = vpop.f32.mrf.mxu0
        %v1719 = vadd.f32 0.0, %v1718
        %1720 = vmatprep.mubr.f32.mxu0 0.0
        %1721 = vmatmul.mubr.f32.gmra.mxu0 %v1636
        %v1722 = vpop.f32.mrf.mxu0
        %v1723 = vadd.f32 0.0, %v1722
        %v1724 = vpop.f32.mrf.mxu0
        %v1725 = vadd.f32 0.0, %v1724
        %1726 = vmatprep.mubr.f32.mxu0 0.0
        %1727 = vmatmul.mubr.f32.gmra.mxu0 %v1639
        %v1728 = vpop.f32.mrf.mxu0
        %v1729 = vadd.f32 0.0, %v1728
        %v1730 = vpop.f32.mrf.mxu0
        %v1731 = vadd.f32 0.0, %v1730
        %1732 = vmatprep.mubr.f32.mxu0 0.0
        %1733 = vmatmul.mubr.f32.gmra.mxu0 %v1642
        %v1734 = vpop.f32.mrf.mxu0
        %v1735 = vadd.f32 0.0, %v1734
        %v1736 = vpop.f32.mrf.mxu0
        %v1737 = vadd.f32 0.0, %v1736
        %1738 = vdwg.mxu0
        %v1739 = vadd.f32 %v1609, %v1717
        %v1740 = vadd.f32 %v1610, %v1719
        %v1741 = vadd.f32 %v1611, %v1723
        %v1742 = vadd.f32 %v1612, %v1725
        %v1743 = vadd.f32 %v1613, %v1729
        %v1744 = vadd.f32 %v1614, %v1731
        %v1745 = vadd.f32 %v1615, %v1735
        %v1746 = vadd.f32 %v1616, %v1737
        %s1747 = scalar_lea.vmem %s4, 64
        %v1748 = vld [vmem:[%s1747] sm:$0xff]
        %v1749 = vld [vmem:[%s1747 + $0x8] sm:$0xff]
        %v1750 = vld [vmem:[%s1747 + $0x10] sm:$0xff]
        %v1751 = vld [vmem:[%s1747 + $0x18] sm:$0xff]
        %v1753 = vsel %vm414, %v1748, 0
        %v1756 = vsel %vm414, %v1749, 0
        %v1759 = vsel %vm414, %v1750, 0
        %v1762 = vsel %vm414, %v1751, 0
        %v1765 = vsel %vm1144, %v1625, 0
        %v1768 = vsel %vm1144, %v1626, 0
        %1770 = vmatprep.subr.mxu0 0.0
        %1771 = vmatpush1.msra.mxu0 0.0
        %1772 = vmatprep.subr.mxu0 0.0
        %1773 = vmatpush1.msra.mxu0 0.0
        %1774 = vmatprep.subr.mxu0 0.0
        %1775 = vmatpush1.msra.mxu0 0.0
        %1776 = vmatprep.subr.mxu0 0.0
        %1777 = vmatpush1.msra.mxu0 0.0
        %1778 = vmatprep.subr.mxu0 0.0
        %1779 = vmatpush1.msra.mxu0 0.0
        %1780 = vmatprep.subr.mxu0 0.0
        %1781 = vmatpush1.msra.mxu0 0.0
        %1782 = vmatprep.subr.mxu0 0.0
        %1783 = vmatpush1.msra.mxu0 0.0
        %1784 = vmatprep.subr.mxu0 0.0
        %1785 = vmatpush1.msra.mxu0 0.0
        %1786 = vmatprep.subr.mxu0 0.0
        %1787 = vmatpush1.msra.mxu0 0.0
        %1788 = vmatprep.subr.mxu0 0.0
        %1789 = vmatpush1.msra.mxu0 0.0
        %1790 = vmatprep.subr.mxu0 0.0
        %1791 = vmatpush1.msra.mxu0 0.0
        %1792 = vmatprep.subr.mxu0 0.0
        %1793 = vmatpush1.msra.mxu0 0.0
        %1794 = vmatprep.subr.mxu0 0.0
        %1795 = vmatpush1.msra.mxu0 0.0
        %1796 = vmatprep.subr.mxu0 0.0
        %1797 = vmatpush1.msra.mxu0 0.0
        %1798 = vmatprep.subr.mxu0 0.0
        %1799 = vmatpush1.msra.mxu0 0.0
        %1800 = vmatprep.subr.mxu0 %v1768
        %1801 = vmatpush1.msra.mxu0 %v1765
        %1802 = vmatprep.subr.mxu0 0.0
        %1803 = vmatpush2.msra.mxu0 0.0
        %1804 = vmatprep.subr.mxu0 0.0
        %1805 = vmatpush2.msra.mxu0 0.0
        %1806 = vmatprep.subr.mxu0 0.0
        %1807 = vmatpush2.msra.mxu0 0.0
        %1808 = vmatprep.subr.mxu0 0.0
        %1809 = vmatpush2.msra.mxu0 0.0
        %1810 = vmatprep.subr.mxu0 0.0
        %1811 = vmatpush2.msra.mxu0 0.0
        %1812 = vmatprep.subr.mxu0 0.0
        %1813 = vmatpush2.msra.mxu0 0.0
        %1814 = vmatprep.subr.mxu0 0.0
        %1815 = vmatpush2.msra.mxu0 0.0
        %1816 = vmatprep.subr.mxu0 0.0
        %1817 = vmatpush2.msra.mxu0 0.0
        %1818 = vmatprep.subr.mxu0 0.0
        %1819 = vmatpush2.msra.mxu0 0.0
        %1820 = vmatprep.subr.mxu0 0.0
        %1821 = vmatpush2.msra.mxu0 0.0
        %1822 = vmatprep.subr.mxu0 0.0
        %1823 = vmatpush2.msra.mxu0 0.0
        %1824 = vmatprep.subr.mxu0 0.0
        %1825 = vmatpush2.msra.mxu0 0.0
        %1826 = vmatprep.subr.mxu0 0.0
        %1827 = vmatpush2.msra.mxu0 0.0
        %1828 = vmatprep.subr.mxu0 0.0
        %1829 = vmatpush2.msra.mxu0 0.0
        %1830 = vmatprep.subr.mxu0 0.0
        %1831 = vmatpush2.msra.mxu0 0.0
        %1832 = vmatprep.subr.mxu0 0.0
        %1833 = vmatpush2.msra.mxu0 0.0
        %1834 = vmatprep.mubr.f32.mxu0 0.0
        %1835 = vmatmul.mubr.f32.gmra.mxu0 %v1753
        %v1836 = vpop.f32.mrf.mxu0
        %v1837 = vadd.f32 0.0, %v1836
        %v1838 = vpop.f32.mrf.mxu0
        %v1839 = vadd.f32 0.0, %v1838
        %1840 = vmatprep.mubr.f32.mxu0 0.0
        %1841 = vmatmul.mubr.f32.gmra.mxu0 %v1756
        %v1842 = vpop.f32.mrf.mxu0
        %v1843 = vadd.f32 0.0, %v1842
        %v1844 = vpop.f32.mrf.mxu0
        %v1845 = vadd.f32 0.0, %v1844
        %1846 = vmatprep.mubr.f32.mxu0 0.0
        %1847 = vmatmul.mubr.f32.gmra.mxu0 %v1759
        %v1848 = vpop.f32.mrf.mxu0
        %v1849 = vadd.f32 0.0, %v1848
        %v1850 = vpop.f32.mrf.mxu0
        %v1851 = vadd.f32 0.0, %v1850
        %1852 = vmatprep.mubr.f32.mxu0 0.0
        %1853 = vmatmul.mubr.f32.gmra.mxu0 %v1762
        %v1854 = vpop.f32.mrf.mxu0
        %v1855 = vadd.f32 0.0, %v1854
        %v1856 = vpop.f32.mrf.mxu0
        %v1857 = vadd.f32 0.0, %v1856
        %1858 = vdwg.mxu0
        %v1859 = vadd.f32 %v1739, %v1837
        %v1860 = vadd.f32 %v1740, %v1839
        %v1861 = vadd.f32 %v1741, %v1843
        %v1862 = vadd.f32 %v1742, %v1845
        %v1863 = vadd.f32 %v1743, %v1849
        %v1864 = vadd.f32 %v1744, %v1851
        %v1865 = vadd.f32 %v1745, %v1855
        %v1866 = vadd.f32 %v1746, %v1857
        %v1867 = vmul.f32 %v1619, %v1625
        %v1868 = vmul.f32 %v1620, %v1626
        %v1869 = vmul.f32 %v1867, 2.0
        %v1870 = vmul.f32 %v1868, 2.0
        %v1871 = vmul.f32 %v1619, %v1619
        %v1872 = vmul.f32 %v1620, %v1620
        %v1873 = vmul.f32 %v1871, 2.0
        %v1874 = vmul.f32 %v1872, 2.0
        %v1875 = vsub.f32 1.0, %v1873
        %v1876 = vsub.f32 1.0, %v1874
        %s1877 = scalar_lea.vmem %s3, 96
        %v1878 = vld [vmem:[%s1877] sm:$0xff]
        %v1879 = vld [vmem:[%s1877 + $0x8] sm:$0xff]
        %v1880 = vld [vmem:[%s1877 + $0x10] sm:$0xff]
        %v1881 = vld [vmem:[%s1877 + $0x18] sm:$0xff]
        %v1883 = vsel %vm414, %v1878, 0
        %v1886 = vsel %vm414, %v1879, 0
        %v1889 = vsel %vm414, %v1880, 0
        %v1892 = vsel %vm414, %v1881, 0
        %v1895 = vsel %vm1144, %v1869, 0
        %v1898 = vsel %vm1144, %v1870, 0
        %1900 = vmatprep.subr.mxu0 0.0
        %1901 = vmatpush1.msra.mxu0 0.0
        %1902 = vmatprep.subr.mxu0 0.0
        %1903 = vmatpush1.msra.mxu0 0.0
        %1904 = vmatprep.subr.mxu0 0.0
        %1905 = vmatpush1.msra.mxu0 0.0
        %1906 = vmatprep.subr.mxu0 0.0
        %1907 = vmatpush1.msra.mxu0 0.0
        %1908 = vmatprep.subr.mxu0 0.0
        %1909 = vmatpush1.msra.mxu0 0.0
        %1910 = vmatprep.subr.mxu0 0.0
        %1911 = vmatpush1.msra.mxu0 0.0
        %1912 = vmatprep.subr.mxu0 0.0
        %1913 = vmatpush1.msra.mxu0 0.0
        %1914 = vmatprep.subr.mxu0 0.0
        %1915 = vmatpush1.msra.mxu0 0.0
        %1916 = vmatprep.subr.mxu0 0.0
        %1917 = vmatpush1.msra.mxu0 0.0
        %1918 = vmatprep.subr.mxu0 0.0
        %1919 = vmatpush1.msra.mxu0 0.0
        %1920 = vmatprep.subr.mxu0 0.0
        %1921 = vmatpush1.msra.mxu0 0.0
        %1922 = vmatprep.subr.mxu0 0.0
        %1923 = vmatpush1.msra.mxu0 0.0
        %1924 = vmatprep.subr.mxu0 0.0
        %1925 = vmatpush1.msra.mxu0 0.0
        %1926 = vmatprep.subr.mxu0 0.0
        %1927 = vmatpush1.msra.mxu0 0.0
        %1928 = vmatprep.subr.mxu0 0.0
        %1929 = vmatpush1.msra.mxu0 0.0
        %1930 = vmatprep.subr.mxu0 %v1898
        %1931 = vmatpush1.msra.mxu0 %v1895
        %1932 = vmatprep.subr.mxu0 0.0
        %1933 = vmatpush2.msra.mxu0 0.0
        %1934 = vmatprep.subr.mxu0 0.0
        %1935 = vmatpush2.msra.mxu0 0.0
        %1936 = vmatprep.subr.mxu0 0.0
        %1937 = vmatpush2.msra.mxu0 0.0
        %1938 = vmatprep.subr.mxu0 0.0
        %1939 = vmatpush2.msra.mxu0 0.0
        %1940 = vmatprep.subr.mxu0 0.0
        %1941 = vmatpush2.msra.mxu0 0.0
        %1942 = vmatprep.subr.mxu0 0.0
        %1943 = vmatpush2.msra.mxu0 0.0
        %1944 = vmatprep.subr.mxu0 0.0
        %1945 = vmatpush2.msra.mxu0 0.0
        %1946 = vmatprep.subr.mxu0 0.0
        %1947 = vmatpush2.msra.mxu0 0.0
        %1948 = vmatprep.subr.mxu0 0.0
        %1949 = vmatpush2.msra.mxu0 0.0
        %1950 = vmatprep.subr.mxu0 0.0
        %1951 = vmatpush2.msra.mxu0 0.0
        %1952 = vmatprep.subr.mxu0 0.0
        %1953 = vmatpush2.msra.mxu0 0.0
        %1954 = vmatprep.subr.mxu0 0.0
        %1955 = vmatpush2.msra.mxu0 0.0
        %1956 = vmatprep.subr.mxu0 0.0
        %1957 = vmatpush2.msra.mxu0 0.0
        %1958 = vmatprep.subr.mxu0 0.0
        %1959 = vmatpush2.msra.mxu0 0.0
        %1960 = vmatprep.subr.mxu0 0.0
        %1961 = vmatpush2.msra.mxu0 0.0
        %1962 = vmatprep.subr.mxu0 0.0
        %1963 = vmatpush2.msra.mxu0 0.0
        %1964 = vmatprep.mubr.f32.mxu0 0.0
        %1965 = vmatmul.mubr.f32.gmra.mxu0 %v1883
        %v1966 = vpop.f32.mrf.mxu0
        %v1967 = vadd.f32 0.0, %v1966
        %v1968 = vpop.f32.mrf.mxu0
        %v1969 = vadd.f32 0.0, %v1968
        %1970 = vmatprep.mubr.f32.mxu0 0.0
        %1971 = vmatmul.mubr.f32.gmra.mxu0 %v1886
        %v1972 = vpop.f32.mrf.mxu0
        %v1973 = vadd.f32 0.0, %v1972
        %v1974 = vpop.f32.mrf.mxu0
        %v1975 = vadd.f32 0.0, %v1974
        %1976 = vmatprep.mubr.f32.mxu0 0.0
        %1977 = vmatmul.mubr.f32.gmra.mxu0 %v1889
        %v1978 = vpop.f32.mrf.mxu0
        %v1979 = vadd.f32 0.0, %v1978
        %v1980 = vpop.f32.mrf.mxu0
        %v1981 = vadd.f32 0.0, %v1980
        %1982 = vmatprep.mubr.f32.mxu0 0.0
        %1983 = vmatmul.mubr.f32.gmra.mxu0 %v1892
        %v1984 = vpop.f32.mrf.mxu0
        %v1985 = vadd.f32 0.0, %v1984
        %v1986 = vpop.f32.mrf.mxu0
        %v1987 = vadd.f32 0.0, %v1986
        %1988 = vdwg.mxu0
        %v1989 = vadd.f32 %v1859, %v1967
        %v1990 = vadd.f32 %v1860, %v1969
        %v1991 = vadd.f32 %v1861, %v1973
        %v1992 = vadd.f32 %v1862, %v1975
        %v1993 = vadd.f32 %v1863, %v1979
        %v1994 = vadd.f32 %v1864, %v1981
        %v1995 = vadd.f32 %v1865, %v1985
        %v1996 = vadd.f32 %v1866, %v1987
        %s1997 = scalar_lea.vmem %s4, 96
        %v1998 = vld [vmem:[%s1997] sm:$0xff]
        %v1999 = vld [vmem:[%s1997 + $0x8] sm:$0xff]
        %v2000 = vld [vmem:[%s1997 + $0x10] sm:$0xff]
        %v2001 = vld [vmem:[%s1997 + $0x18] sm:$0xff]
        %v2003 = vsel %vm414, %v1998, 0
        %v2006 = vsel %vm414, %v1999, 0
        %v2009 = vsel %vm414, %v2000, 0
        %v2012 = vsel %vm414, %v2001, 0
        %v2015 = vsel %vm1144, %v1875, 0
        %v2018 = vsel %vm1144, %v1876, 0
        %2020 = vmatprep.subr.mxu0 0.0
        %2021 = vmatpush1.msra.mxu0 0.0
        %2022 = vmatprep.subr.mxu0 0.0
        %2023 = vmatpush1.msra.mxu0 0.0
        %2024 = vmatprep.subr.mxu0 0.0
        %2025 = vmatpush1.msra.mxu0 0.0
        %2026 = vmatprep.subr.mxu0 0.0
        %2027 = vmatpush1.msra.mxu0 0.0
        %2028 = vmatprep.subr.mxu0 0.0
        %2029 = vmatpush1.msra.mxu0 0.0
        %2030 = vmatprep.subr.mxu0 0.0
        %2031 = vmatpush1.msra.mxu0 0.0
        %2032 = vmatprep.subr.mxu0 0.0
        %2033 = vmatpush1.msra.mxu0 0.0
        %2034 = vmatprep.subr.mxu0 0.0
        %2035 = vmatpush1.msra.mxu0 0.0
        %2036 = vmatprep.subr.mxu0 0.0
        %2037 = vmatpush1.msra.mxu0 0.0
        %2038 = vmatprep.subr.mxu0 0.0
        %2039 = vmatpush1.msra.mxu0 0.0
        %2040 = vmatprep.subr.mxu0 0.0
        %2041 = vmatpush1.msra.mxu0 0.0
        %2042 = vmatprep.subr.mxu0 0.0
        %2043 = vmatpush1.msra.mxu0 0.0
        %2044 = vmatprep.subr.mxu0 0.0
        %2045 = vmatpush1.msra.mxu0 0.0
        %2046 = vmatprep.subr.mxu0 0.0
        %2047 = vmatpush1.msra.mxu0 0.0
        %2048 = vmatprep.subr.mxu0 0.0
        %2049 = vmatpush1.msra.mxu0 0.0
        %2050 = vmatprep.subr.mxu0 %v2018
        %2051 = vmatpush1.msra.mxu0 %v2015
        %2052 = vmatprep.subr.mxu0 0.0
        %2053 = vmatpush2.msra.mxu0 0.0
        %2054 = vmatprep.subr.mxu0 0.0
        %2055 = vmatpush2.msra.mxu0 0.0
        %2056 = vmatprep.subr.mxu0 0.0
        %2057 = vmatpush2.msra.mxu0 0.0
        %2058 = vmatprep.subr.mxu0 0.0
        %2059 = vmatpush2.msra.mxu0 0.0
        %2060 = vmatprep.subr.mxu0 0.0
        %2061 = vmatpush2.msra.mxu0 0.0
        %2062 = vmatprep.subr.mxu0 0.0
        %2063 = vmatpush2.msra.mxu0 0.0
        %2064 = vmatprep.subr.mxu0 0.0
        %2065 = vmatpush2.msra.mxu0 0.0
        %2066 = vmatprep.subr.mxu0 0.0
        %2067 = vmatpush2.msra.mxu0 0.0
        %2068 = vmatprep.subr.mxu0 0.0
        %2069 = vmatpush2.msra.mxu0 0.0
        %2070 = vmatprep.subr.mxu0 0.0
        %2071 = vmatpush2.msra.mxu0 0.0
        %2072 = vmatprep.subr.mxu0 0.0
        %2073 = vmatpush2.msra.mxu0 0.0
        %2074 = vmatprep.subr.mxu0 0.0
        %2075 = vmatpush2.msra.mxu0 0.0
        %2076 = vmatprep.subr.mxu0 0.0
        %2077 = vmatpush2.msra.mxu0 0.0
        %2078 = vmatprep.subr.mxu0 0.0
        %2079 = vmatpush2.msra.mxu0 0.0
        %2080 = vmatprep.subr.mxu0 0.0
        %2081 = vmatpush2.msra.mxu0 0.0
        %2082 = vmatprep.subr.mxu0 0.0
        %2083 = vmatpush2.msra.mxu0 0.0
        %2084 = vmatprep.mubr.f32.mxu0 0.0
        %2085 = vmatmul.mubr.f32.gmra.mxu0 %v2003
        %v2086 = vpop.f32.mrf.mxu0
        %v2087 = vadd.f32 0.0, %v2086
        %v2088 = vpop.f32.mrf.mxu0
        %v2089 = vadd.f32 0.0, %v2088
        %2090 = vmatprep.mubr.f32.mxu0 0.0
        %2091 = vmatmul.mubr.f32.gmra.mxu0 %v2006
        %v2092 = vpop.f32.mrf.mxu0
        %v2093 = vadd.f32 0.0, %v2092
        %v2094 = vpop.f32.mrf.mxu0
        %v2095 = vadd.f32 0.0, %v2094
        %2096 = vmatprep.mubr.f32.mxu0 0.0
        %2097 = vmatmul.mubr.f32.gmra.mxu0 %v2009
        %v2098 = vpop.f32.mrf.mxu0
        %v2099 = vadd.f32 0.0, %v2098
        %v2100 = vpop.f32.mrf.mxu0
        %v2101 = vadd.f32 0.0, %v2100
        %2102 = vmatprep.mubr.f32.mxu0 0.0
        %2103 = vmatmul.mubr.f32.gmra.mxu0 %v2012
        %v2104 = vpop.f32.mrf.mxu0
        %v2105 = vadd.f32 0.0, %v2104
        %v2106 = vpop.f32.mrf.mxu0
        %v2107 = vadd.f32 0.0, %v2106
        %2108 = vdwg.mxu0
        %v2109 = vadd.f32 %v1989, %v2087
        %v2110 = vadd.f32 %v1990, %v2089
        %v2111 = vadd.f32 %v1991, %v2093
        %v2112 = vadd.f32 %v1992, %v2095
        %v2113 = vadd.f32 %v1993, %v2099
        %v2114 = vadd.f32 %v1994, %v2101
        %v2115 = vadd.f32 %v1995, %v2105
        %v2116 = vadd.f32 %v1996, %v2107
        %v2117 = vmax.f32 %v2109, 0.0
        %v2118 = vmax.f32 %v2110, 0.0
        %v2119 = vmax.f32 %v2111, 0.0
        %v2120 = vmax.f32 %v2112, 0.0
        %v2121 = vmax.f32 %v2113, 0.0
        %v2122 = vmax.f32 %v2114, 0.0
        %v2123 = vmax.f32 %v2115, 0.0
        %v2124 = vmax.f32 %v2116, 0.0
        %v2125 = vld [vmem:[%s6] sm:$0xff]
        %v2126 = vld [vmem:[%s6 + $0x8] sm:$0xff]
        %v2127 = vld [vmem:[%s6 + $0x10] sm:$0xff]
        %v2128 = vld [vmem:[%s6 + $0x18] sm:$0xff]
        %v2129 = vld [vmem:[%s7] sm:$0xff]
        %v2130 = vld [vmem:[%s7 + $0x8] sm:$0xff]
        %v2131 = vld [vmem:[%s7 + $0x10] sm:$0xff]
        %v2132 = vld [vmem:[%s7 + $0x18] sm:$0xff]
        %2134 = vset.pattern.permute.xlu0 0
        %2135 = vperm.xlu0 %2134, %v2129
        %v2136 = vpop.permute.xlu0 %2135
        %2139 = vset.pattern.permute.xlu0 0
        %2140 = vperm.xlu0 %2139, %v2130
        %v2141 = vpop.permute.xlu0 %2140
        %2144 = vset.pattern.permute.xlu0 0
        %2145 = vperm.xlu0 %2144, %v2131
        %v2146 = vpop.permute.xlu0 %2145
        %2149 = vset.pattern.permute.xlu0 0
        %2150 = vperm.xlu0 %2149, %v2132
        %v2151 = vpop.permute.xlu0 %2150
        %vm2153 = vcmask 261120
        %v2155 = vsel %vm2153, %v2125, 0
        %v2158 = vsel %vm2153, %v2126, 0
        %v2161 = vsel %vm2153, %v2127, 0
        %v2164 = vsel %vm2153, %v2128, 0
        %2166 = vmatprep.subr.mxu0 0.0
        %2167 = vmatpush1.msra.mxu0 0.0
        %2168 = vmatprep.subr.mxu0 0.0
        %2169 = vmatpush1.msra.mxu0 0.0
        %2170 = vmatprep.subr.mxu0 0.0
        %2171 = vmatpush1.msra.mxu0 0.0
        %2172 = vmatprep.subr.mxu0 0.0
        %2173 = vmatpush1.msra.mxu0 0.0
        %2174 = vmatprep.subr.mxu0 0.0
        %2175 = vmatpush1.msra.mxu0 0.0
        %2176 = vmatprep.subr.mxu0 0.0
        %2177 = vmatpush1.msra.mxu0 0.0
        %2178 = vmatprep.subr.mxu0 0.0
        %2179 = vmatpush1.msra.mxu0 0.0
        %2180 = vmatprep.subr.mxu0 0.0
        %2181 = vmatpush1.msra.mxu0 0.0
        %2182 = vmatprep.subr.mxu0 0.0
        %2183 = vmatpush1.msra.mxu0 0.0
        %2184 = vmatprep.subr.mxu0 0.0
        %2185 = vmatpush1.msra.mxu0 0.0
        %2186 = vmatprep.subr.mxu0 0.0
        %2187 = vmatpush1.msra.mxu0 0.0
        %2188 = vmatprep.subr.mxu0 0.0
        %2189 = vmatpush1.msra.mxu0 0.0
        %2190 = vmatprep.subr.mxu0 %v2124
        %2191 = vmatpush1.msra.mxu0 %v2123
        %2192 = vmatprep.subr.mxu0 %v2122
        %2193 = vmatpush1.msra.mxu0 %v2121
        %2194 = vmatprep.subr.mxu0 %v2120
        %2195 = vmatpush1.msra.mxu0 %v2119
        %2196 = vmatprep.subr.mxu0 %v2118
        %2197 = vmatpush1.msra.mxu0 %v2117
        %2198 = vmatprep.subr.mxu0 0.0
        %2199 = vmatpush2.msra.mxu0 0.0
        %2200 = vmatprep.subr.mxu0 0.0
        %2201 = vmatpush2.msra.mxu0 0.0
        %2202 = vmatprep.subr.mxu0 0.0
        %2203 = vmatpush2.msra.mxu0 0.0
        %2204 = vmatprep.subr.mxu0 0.0
        %2205 = vmatpush2.msra.mxu0 0.0
        %2206 = vmatprep.subr.mxu0 0.0
        %2207 = vmatpush2.msra.mxu0 0.0
        %2208 = vmatprep.subr.mxu0 0.0
        %2209 = vmatpush2.msra.mxu0 0.0
        %2210 = vmatprep.subr.mxu0 0.0
        %2211 = vmatpush2.msra.mxu0 0.0
        %2212 = vmatprep.subr.mxu0 0.0
        %2213 = vmatpush2.msra.mxu0 0.0
        %2214 = vmatprep.subr.mxu0 0.0
        %2215 = vmatpush2.msra.mxu0 0.0
        %2216 = vmatprep.subr.mxu0 0.0
        %2217 = vmatpush2.msra.mxu0 0.0
        %2218 = vmatprep.subr.mxu0 0.0
        %2219 = vmatpush2.msra.mxu0 0.0
        %2220 = vmatprep.subr.mxu0 0.0
        %2221 = vmatpush2.msra.mxu0 0.0
        %2222 = vmatprep.subr.mxu0 0.0
        %2223 = vmatpush2.msra.mxu0 0.0
        %2224 = vmatprep.subr.mxu0 0.0
        %2225 = vmatpush2.msra.mxu0 0.0
        %2226 = vmatprep.subr.mxu0 0.0
        %2227 = vmatpush2.msra.mxu0 0.0
        %2228 = vmatprep.subr.mxu0 0.0
        %2229 = vmatpush2.msra.mxu0 0.0
        %2230 = vmatprep.mubr.f32.mxu0 0.0
        %2231 = vmatmul.mubr.f32.gmra.mxu0 %v2155
        %v2232 = vpop.f32.mrf.mxu0
        %v2233 = vadd.f32 %v2136, %v2232
        %v2234 = vpop.f32.mrf.mxu0
        %v2235 = vadd.f32 %v2136, %v2234
        %2236 = vmatprep.mubr.f32.mxu0 0.0
        %2237 = vmatmul.mubr.f32.gmra.mxu0 %v2158
        %v2238 = vpop.f32.mrf.mxu0
        %v2239 = vadd.f32 %v2141, %v2238
        %v2240 = vpop.f32.mrf.mxu0
        %v2241 = vadd.f32 %v2141, %v2240
        %2242 = vmatprep.mubr.f32.mxu0 0.0
        %2243 = vmatmul.mubr.f32.gmra.mxu0 %v2161
        %v2244 = vpop.f32.mrf.mxu0
        %v2245 = vadd.f32 %v2146, %v2244
        %v2246 = vpop.f32.mrf.mxu0
        %v2247 = vadd.f32 %v2146, %v2246
        %2248 = vmatprep.mubr.f32.mxu0 0.0
        %2249 = vmatmul.mubr.f32.gmra.mxu0 %v2164
        %v2250 = vpop.f32.mrf.mxu0
        %v2251 = vadd.f32 %v2151, %v2250
        %v2252 = vpop.f32.mrf.mxu0
        %v2253 = vadd.f32 %v2151, %v2252
        %2254 = vdwg.mxu0
        %v2255 = vmax.f32 %v2233, 0.0
        %v2256 = vmax.f32 %v2235, 0.0
        %v2257 = vmax.f32 %v2239, 0.0
        %v2258 = vmax.f32 %v2241, 0.0
        %v2259 = vmax.f32 %v2245, 0.0
        %v2260 = vmax.f32 %v2247, 0.0
        %v2261 = vmax.f32 %v2251, 0.0
        %v2262 = vmax.f32 %v2253, 0.0
        %v2263 = vld [vmem:[%s8] sm:$0xff]
        %v2264 = vld [vmem:[%s8 + $0x8] sm:$0xff]
        %v2265 = vld [vmem:[%s8 + $0x10] sm:$0xff]
        %v2266 = vld [vmem:[%s8 + $0x18] sm:$0xff]
        %v2267 = vld [vmem:[%s9] sm:$0x1]
        %v2269 = vlaneseq
        %v2270 = vshrl.u32 %v2269, 7
        %v2271 = vsub.s32 0, %v2270
        %v2272 = vrot.slane %v2267, %v2271
        %2274 = vxpose.xlu0.b32.start [1/16] %v2255, 128
        %2275 = vxpose.xlu0.b32.cont [2/16] %v2257, 128
        %2276 = vxpose.xlu0.b32.cont [3/16] %v2259, 128
        %2277 = vxpose.xlu0.b32.cont [4/16] %v2261, 128
        %2278 = vxpose.xlu0.b32.cont [5/16] 0.0, 128
        %2279 = vxpose.xlu0.b32.cont [6/16] 0.0, 128
        %2280 = vxpose.xlu0.b32.cont [7/16] 0.0, 128
        %2281 = vxpose.xlu0.b32.cont [8/16] 0.0, 128
        %2282 = vxpose.xlu0.b32.cont [9/16] 0.0, 128
        %2283 = vxpose.xlu0.b32.cont [10/16] 0.0, 128
        %2284 = vxpose.xlu0.b32.cont [11/16] 0.0, 128
        %2285 = vxpose.xlu0.b32.cont [12/16] 0.0, 128
        %2286 = vxpose.xlu0.b32.cont [13/16] 0.0, 128
        %2287 = vxpose.xlu0.b32.cont [14/16] 0.0, 128
        %2288 = vxpose.xlu0.b32.cont [15/16] 0.0, 128
        %2289 = vxpose.xlu0.b32.end [16/16] 0.0, 128
        %v2290 = vpop.trf.xlu0
        %v2291 = vpop.trf.xlu0
        %v2292 = vpop.trf.xlu0
        %v2293 = vpop.trf.xlu0
        %v2294 = vpop.trf.xlu0
        %v2295 = vpop.trf.xlu0
        %v2296 = vpop.trf.xlu0
        %v2297 = vpop.trf.xlu0
        %v2298 = vpop.trf.xlu0
        %v2299 = vpop.trf.xlu0
        %v2300 = vpop.trf.xlu0
        %v2301 = vpop.trf.xlu0
        %v2302 = vpop.trf.xlu0
        %v2303 = vpop.trf.xlu0
        %v2304 = vpop.trf.xlu0
        %v2305 = vpop.trf.xlu0
        %2306 = vxpose.xlu0.b32.start [1/16] %v2256, 128
        %2307 = vxpose.xlu0.b32.cont [2/16] %v2258, 128
        %2308 = vxpose.xlu0.b32.cont [3/16] %v2260, 128
        %2309 = vxpose.xlu0.b32.cont [4/16] %v2262, 128
        %2310 = vxpose.xlu0.b32.cont [5/16] 0.0, 128
        %2311 = vxpose.xlu0.b32.cont [6/16] 0.0, 128
        %2312 = vxpose.xlu0.b32.cont [7/16] 0.0, 128
        %2313 = vxpose.xlu0.b32.cont [8/16] 0.0, 128
        %2314 = vxpose.xlu0.b32.cont [9/16] 0.0, 128
        %2315 = vxpose.xlu0.b32.cont [10/16] 0.0, 128
        %2316 = vxpose.xlu0.b32.cont [11/16] 0.0, 128
        %2317 = vxpose.xlu0.b32.cont [12/16] 0.0, 128
        %2318 = vxpose.xlu0.b32.cont [13/16] 0.0, 128
        %2319 = vxpose.xlu0.b32.cont [14/16] 0.0, 128
        %2320 = vxpose.xlu0.b32.cont [15/16] 0.0, 128
        %2321 = vxpose.xlu0.b32.end [16/16] 0.0, 128
        %v2322 = vpop.trf.xlu0
        %v2323 = vpop.trf.xlu0
        %v2324 = vpop.trf.xlu0
        %v2325 = vpop.trf.xlu0
        %v2326 = vpop.trf.xlu0
        %v2327 = vpop.trf.xlu0
        %v2328 = vpop.trf.xlu0
        %v2329 = vpop.trf.xlu0
        %v2330 = vpop.trf.xlu0
        %v2331 = vpop.trf.xlu0
        %v2332 = vpop.trf.xlu0
        %v2333 = vpop.trf.xlu0
        %v2334 = vpop.trf.xlu0
        %v2335 = vpop.trf.xlu0
        %v2336 = vpop.trf.xlu0
        %v2337 = vpop.trf.xlu0
        %v2339 = vsel %vm2153, %v2290, 0
        %v2342 = vsel %vm2153, %v2291, 0
        %v2345 = vsel %vm2153, %v2292, 0
        %v2348 = vsel %vm2153, %v2293, 0
        %v2351 = vsel %vm2153, %v2294, 0
        %v2354 = vsel %vm2153, %v2295, 0
        %v2357 = vsel %vm2153, %v2296, 0
        %v2360 = vsel %vm2153, %v2297, 0
        %v2363 = vsel %vm2153, %v2298, 0
        %v2366 = vsel %vm2153, %v2299, 0
        %v2369 = vsel %vm2153, %v2300, 0
        %v2372 = vsel %vm2153, %v2301, 0
        %v2375 = vsel %vm2153, %v2302, 0
        %v2378 = vsel %vm2153, %v2303, 0
        %v2381 = vsel %vm2153, %v2304, 0
        %v2384 = vsel %vm2153, %v2305, 0
        %v2387 = vsel %vm2153, %v2322, 0
        %v2390 = vsel %vm2153, %v2323, 0
        %v2393 = vsel %vm2153, %v2324, 0
        %v2396 = vsel %vm2153, %v2325, 0
        %v2399 = vsel %vm2153, %v2326, 0
        %v2402 = vsel %vm2153, %v2327, 0
        %v2405 = vsel %vm2153, %v2328, 0
        %v2408 = vsel %vm2153, %v2329, 0
        %v2411 = vsel %vm2153, %v2330, 0
        %v2414 = vsel %vm2153, %v2331, 0
        %v2417 = vsel %vm2153, %v2332, 0
        %v2420 = vsel %vm2153, %v2333, 0
        %v2423 = vsel %vm2153, %v2334, 0
        %v2426 = vsel %vm2153, %v2335, 0
        %v2429 = vsel %vm2153, %v2336, 0
        %v2432 = vsel %vm2153, %v2337, 0
        %2434 = vmatprep.subr.mxu0 0.0
        %2435 = vmatpush1.msra.mxu0 0.0
        %2436 = vmatprep.subr.mxu0 0.0
        %2437 = vmatpush1.msra.mxu0 0.0
        %2438 = vmatprep.subr.mxu0 0.0
        %2439 = vmatpush1.msra.mxu0 0.0
        %2440 = vmatprep.subr.mxu0 0.0
        %2441 = vmatpush1.msra.mxu0 0.0
        %2442 = vmatprep.subr.mxu0 0.0
        %2443 = vmatpush1.msra.mxu0 0.0
        %2444 = vmatprep.subr.mxu0 0.0
        %2445 = vmatpush1.msra.mxu0 0.0
        %2446 = vmatprep.subr.mxu0 0.0
        %2447 = vmatpush1.msra.mxu0 0.0
        %2448 = vmatprep.subr.mxu0 0.0
        %2449 = vmatpush1.msra.mxu0 0.0
        %2450 = vmatprep.subr.mxu0 0.0
        %2451 = vmatpush1.msra.mxu0 0.0
        %2452 = vmatprep.subr.mxu0 0.0
        %2453 = vmatpush1.msra.mxu0 0.0
        %2454 = vmatprep.subr.mxu0 0.0
        %2455 = vmatpush1.msra.mxu0 0.0
        %2456 = vmatprep.subr.mxu0 0.0
        %2457 = vmatpush1.msra.mxu0 0.0
        %2458 = vmatprep.subr.mxu0 0.0
        %2459 = vmatpush1.msra.mxu0 %v2266
        %2460 = vmatprep.subr.mxu0 0.0
        %2461 = vmatpush1.msra.mxu0 %v2265
        %2462 = vmatprep.subr.mxu0 0.0
        %2463 = vmatpush1.msra.mxu0 %v2264
        %2464 = vmatprep.subr.mxu0 0.0
        %2465 = vmatpush1.msra.mxu0 %v2263
        %2466 = vmatprep.subr.mxu0 0.0
        %2467 = vmatpush2.msra.mxu0 0.0
        %2468 = vmatprep.subr.mxu0 0.0
        %2469 = vmatpush2.msra.mxu0 0.0
        %2470 = vmatprep.subr.mxu0 0.0
        %2471 = vmatpush2.msra.mxu0 0.0
        %2472 = vmatprep.subr.mxu0 0.0
        %2473 = vmatpush2.msra.mxu0 0.0
        %2474 = vmatprep.subr.mxu0 0.0
        %2475 = vmatpush2.msra.mxu0 0.0
        %2476 = vmatprep.subr.mxu0 0.0
        %2477 = vmatpush2.msra.mxu0 0.0
        %2478 = vmatprep.subr.mxu0 0.0
        %2479 = vmatpush2.msra.mxu0 0.0
        %2480 = vmatprep.subr.mxu0 0.0
        %2481 = vmatpush2.msra.mxu0 0.0
        %2482 = vmatprep.subr.mxu0 0.0
        %2483 = vmatpush2.msra.mxu0 0.0
        %2484 = vmatprep.subr.mxu0 0.0
        %2485 = vmatpush2.msra.mxu0 0.0
        %2486 = vmatprep.subr.mxu0 0.0
        %2487 = vmatpush2.msra.mxu0 0.0
        %2488 = vmatprep.subr.mxu0 0.0
        %2489 = vmatpush2.msra.mxu0 0.0
        %2490 = vmatprep.subr.mxu0 0.0
        %2491 = vmatpush2.msra.mxu0 0.0
        %2492 = vmatprep.subr.mxu0 0.0
        %2493 = vmatpush2.msra.mxu0 0.0
        %2494 = vmatprep.subr.mxu0 0.0
        %2495 = vmatpush2.msra.mxu0 0.0
        %2496 = vmatprep.subr.mxu0 0.0
        %2497 = vmatpush2.msra.mxu0 0.0
        %2498 = vmatprep.mubr.f32.mxu0 0.0
        %2499 = vmatmul.mubr.f32.gmra.mxu0 %v2339
        %v2500 = vpop.f32.mrf.mxu0
        %v2501 = vadd.f32 %v2272, %v2500
        %v2502 = vpop.f32.mrf.mxu0
        %2503 = vmatprep.mubr.f32.mxu0 0.0
        %2504 = vmatmul.mubr.f32.gmra.mxu0 %v2342
        %v2505 = vpop.f32.mrf.mxu0
        %v2506 = vadd.f32 %v2272, %v2505
        %v2507 = vpop.f32.mrf.mxu0
        %2508 = vmatprep.mubr.f32.mxu0 0.0
        %2509 = vmatmul.mubr.f32.gmra.mxu0 %v2345
        %v2510 = vpop.f32.mrf.mxu0
        %v2511 = vadd.f32 %v2272, %v2510
        %v2512 = vpop.f32.mrf.mxu0
        %2513 = vmatprep.mubr.f32.mxu0 0.0
        %2514 = vmatmul.mubr.f32.gmra.mxu0 %v2348
        %v2515 = vpop.f32.mrf.mxu0
        %v2516 = vadd.f32 %v2272, %v2515
        %v2517 = vpop.f32.mrf.mxu0
        %2518 = vmatprep.mubr.f32.mxu0 0.0
        %2519 = vmatmul.mubr.f32.gmra.mxu0 %v2351
        %v2520 = vpop.f32.mrf.mxu0
        %v2521 = vadd.f32 %v2272, %v2520
        %v2522 = vpop.f32.mrf.mxu0
        %2523 = vmatprep.mubr.f32.mxu0 0.0
        %2524 = vmatmul.mubr.f32.gmra.mxu0 %v2354
        %v2525 = vpop.f32.mrf.mxu0
        %v2526 = vadd.f32 %v2272, %v2525
        %v2527 = vpop.f32.mrf.mxu0
        %2528 = vmatprep.mubr.f32.mxu0 0.0
        %2529 = vmatmul.mubr.f32.gmra.mxu0 %v2357
        %v2530 = vpop.f32.mrf.mxu0
        %v2531 = vadd.f32 %v2272, %v2530
        %v2532 = vpop.f32.mrf.mxu0
        %2533 = vmatprep.mubr.f32.mxu0 0.0
        %2534 = vmatmul.mubr.f32.gmra.mxu0 %v2360
        %v2535 = vpop.f32.mrf.mxu0
        %v2536 = vadd.f32 %v2272, %v2535
        %v2537 = vpop.f32.mrf.mxu0
        %2538 = vmatprep.mubr.f32.mxu0 0.0
        %2539 = vmatmul.mubr.f32.gmra.mxu0 %v2363
        %v2540 = vpop.f32.mrf.mxu0
        %v2541 = vadd.f32 %v2272, %v2540
        %v2542 = vpop.f32.mrf.mxu0
        %2543 = vmatprep.mubr.f32.mxu0 0.0
        %2544 = vmatmul.mubr.f32.gmra.mxu0 %v2366
        %v2545 = vpop.f32.mrf.mxu0
        %v2546 = vadd.f32 %v2272, %v2545
        %v2547 = vpop.f32.mrf.mxu0
        %2548 = vmatprep.mubr.f32.mxu0 0.0
        %2549 = vmatmul.mubr.f32.gmra.mxu0 %v2369
        %v2550 = vpop.f32.mrf.mxu0
        %v2551 = vadd.f32 %v2272, %v2550
        %v2552 = vpop.f32.mrf.mxu0
        %2553 = vmatprep.mubr.f32.mxu0 0.0
        %2554 = vmatmul.mubr.f32.gmra.mxu0 %v2372
        %v2555 = vpop.f32.mrf.mxu0
        %v2556 = vadd.f32 %v2272, %v2555
        %v2557 = vpop.f32.mrf.mxu0
        %2558 = vmatprep.mubr.f32.mxu0 0.0
        %2559 = vmatmul.mubr.f32.gmra.mxu0 %v2375
        %v2560 = vpop.f32.mrf.mxu0
        %v2561 = vadd.f32 %v2272, %v2560
        %v2562 = vpop.f32.mrf.mxu0
        %2563 = vmatprep.mubr.f32.mxu0 0.0
        %2564 = vmatmul.mubr.f32.gmra.mxu0 %v2378
        %v2565 = vpop.f32.mrf.mxu0
        %v2566 = vadd.f32 %v2272, %v2565
        %v2567 = vpop.f32.mrf.mxu0
        %2568 = vmatprep.mubr.f32.mxu0 0.0
        %2569 = vmatmul.mubr.f32.gmra.mxu0 %v2381
        %v2570 = vpop.f32.mrf.mxu0
        %v2571 = vadd.f32 %v2272, %v2570
        %v2572 = vpop.f32.mrf.mxu0
        %2573 = vmatprep.mubr.f32.mxu0 0.0
        %2574 = vmatmul.mubr.f32.gmra.mxu0 %v2384
        %v2575 = vpop.f32.mrf.mxu0
        %v2576 = vadd.f32 %v2272, %v2575
        %v2577 = vpop.f32.mrf.mxu0
        %2578 = vmatprep.mubr.f32.mxu0 0.0
        %2579 = vmatmul.mubr.f32.gmra.mxu0 %v2387
        %v2580 = vpop.f32.mrf.mxu0
        %v2581 = vadd.f32 %v2272, %v2580
        %v2582 = vpop.f32.mrf.mxu0
        %2583 = vmatprep.mubr.f32.mxu0 0.0
        %2584 = vmatmul.mubr.f32.gmra.mxu0 %v2390
        %v2585 = vpop.f32.mrf.mxu0
        %v2586 = vadd.f32 %v2272, %v2585
        %v2587 = vpop.f32.mrf.mxu0
        %2588 = vmatprep.mubr.f32.mxu0 0.0
        %2589 = vmatmul.mubr.f32.gmra.mxu0 %v2393
        %v2590 = vpop.f32.mrf.mxu0
        %v2591 = vadd.f32 %v2272, %v2590
        %v2592 = vpop.f32.mrf.mxu0
        %2593 = vmatprep.mubr.f32.mxu0 0.0
        %2594 = vmatmul.mubr.f32.gmra.mxu0 %v2396
        %v2595 = vpop.f32.mrf.mxu0
        %v2596 = vadd.f32 %v2272, %v2595
        %v2597 = vpop.f32.mrf.mxu0
        %2598 = vmatprep.mubr.f32.mxu0 0.0
        %2599 = vmatmul.mubr.f32.gmra.mxu0 %v2399
        %v2600 = vpop.f32.mrf.mxu0
        %v2601 = vadd.f32 %v2272, %v2600
        %v2602 = vpop.f32.mrf.mxu0
        %2603 = vmatprep.mubr.f32.mxu0 0.0
        %2604 = vmatmul.mubr.f32.gmra.mxu0 %v2402
        %v2605 = vpop.f32.mrf.mxu0
        %v2606 = vadd.f32 %v2272, %v2605
        %v2607 = vpop.f32.mrf.mxu0
        %2608 = vmatprep.mubr.f32.mxu0 0.0
        %2609 = vmatmul.mubr.f32.gmra.mxu0 %v2405
        %v2610 = vpop.f32.mrf.mxu0
        %v2611 = vadd.f32 %v2272, %v2610
        %v2612 = vpop.f32.mrf.mxu0
        %2613 = vmatprep.mubr.f32.mxu0 0.0
        %2614 = vmatmul.mubr.f32.gmra.mxu0 %v2408
        %v2615 = vpop.f32.mrf.mxu0
        %v2616 = vadd.f32 %v2272, %v2615
        %v2617 = vpop.f32.mrf.mxu0
        %2618 = vmatprep.mubr.f32.mxu0 0.0
        %2619 = vmatmul.mubr.f32.gmra.mxu0 %v2411
        %v2620 = vpop.f32.mrf.mxu0
        %v2621 = vadd.f32 %v2272, %v2620
        %v2622 = vpop.f32.mrf.mxu0
        %2623 = vmatprep.mubr.f32.mxu0 0.0
        %2624 = vmatmul.mubr.f32.gmra.mxu0 %v2414
        %v2625 = vpop.f32.mrf.mxu0
        %v2626 = vadd.f32 %v2272, %v2625
        %v2627 = vpop.f32.mrf.mxu0
        %2628 = vmatprep.mubr.f32.mxu0 0.0
        %2629 = vmatmul.mubr.f32.gmra.mxu0 %v2417
        %v2630 = vpop.f32.mrf.mxu0
        %v2631 = vadd.f32 %v2272, %v2630
        %v2632 = vpop.f32.mrf.mxu0
        %2633 = vmatprep.mubr.f32.mxu0 0.0
        %2634 = vmatmul.mubr.f32.gmra.mxu0 %v2420
        %v2635 = vpop.f32.mrf.mxu0
        %v2636 = vadd.f32 %v2272, %v2635
        %v2637 = vpop.f32.mrf.mxu0
        %2638 = vmatprep.mubr.f32.mxu0 0.0
        %2639 = vmatmul.mubr.f32.gmra.mxu0 %v2423
        %v2640 = vpop.f32.mrf.mxu0
        %v2641 = vadd.f32 %v2272, %v2640
        %v2642 = vpop.f32.mrf.mxu0
        %2643 = vmatprep.mubr.f32.mxu0 0.0
        %2644 = vmatmul.mubr.f32.gmra.mxu0 %v2426
        %v2645 = vpop.f32.mrf.mxu0
        %v2646 = vadd.f32 %v2272, %v2645
        %v2647 = vpop.f32.mrf.mxu0
        %2648 = vmatprep.mubr.f32.mxu0 0.0
        %2649 = vmatmul.mubr.f32.gmra.mxu0 %v2429
        %v2650 = vpop.f32.mrf.mxu0
        %v2651 = vadd.f32 %v2272, %v2650
        %v2652 = vpop.f32.mrf.mxu0
        %2653 = vmatprep.mubr.f32.mxu0 0.0
        %2654 = vmatmul.mubr.f32.gmra.mxu0 %v2432
        %v2655 = vpop.f32.mrf.mxu0
        %v2656 = vadd.f32 %v2272, %v2655
        %v2657 = vpop.f32.mrf.mxu0
        %2658 = vdwg.mxu0
        %vm2659 = vcmask 130048
        %2660 = vst.msk [vmem:[%s361] sm:$0xff] %vm2659, %v2501
        %2661 = vst.msk [vmem:[%s361 + $0x8] sm:$0xff] %vm2659, %v2506
        %2662 = vst.msk [vmem:[%s361 + $0x10] sm:$0xff] %vm2659, %v2511
        %2663 = vst.msk [vmem:[%s361 + $0x18] sm:$0xff] %vm2659, %v2516
        %2664 = vst.msk [vmem:[%s361 + $0x20] sm:$0xff] %vm2659, %v2521
        %2665 = vst.msk [vmem:[%s361 + $0x28] sm:$0xff] %vm2659, %v2526
        %2666 = vst.msk [vmem:[%s361 + $0x30] sm:$0xff] %vm2659, %v2531
        %2667 = vst.msk [vmem:[%s361 + $0x38] sm:$0xff] %vm2659, %v2536
        %2668 = vst.msk [vmem:[%s361 + $0x40] sm:$0xff] %vm2659, %v2541
        %2669 = vst.msk [vmem:[%s361 + $0x48] sm:$0xff] %vm2659, %v2546
        %2670 = vst.msk [vmem:[%s361 + $0x50] sm:$0xff] %vm2659, %v2551
        %2671 = vst.msk [vmem:[%s361 + $0x58] sm:$0xff] %vm2659, %v2556
        %2672 = vst.msk [vmem:[%s361 + $0x60] sm:$0xff] %vm2659, %v2561
        %2673 = vst.msk [vmem:[%s361 + $0x68] sm:$0xff] %vm2659, %v2566
        %2674 = vst.msk [vmem:[%s361 + $0x70] sm:$0xff] %vm2659, %v2571
        %2675 = vst.msk [vmem:[%s361 + $0x78] sm:$0xff] %vm2659, %v2576
        %2676 = vst.msk [vmem:[%s361 + $0x80] sm:$0xff] %vm2659, %v2581
        %2677 = vst.msk [vmem:[%s361 + $0x88] sm:$0xff] %vm2659, %v2586
        %2678 = vst.msk [vmem:[%s361 + $0x90] sm:$0xff] %vm2659, %v2591
        %2679 = vst.msk [vmem:[%s361 + $0x98] sm:$0xff] %vm2659, %v2596
        %2680 = vst.msk [vmem:[%s361 + $0xa0] sm:$0xff] %vm2659, %v2601
        %2681 = vst.msk [vmem:[%s361 + $0xa8] sm:$0xff] %vm2659, %v2606
        %2682 = vst.msk [vmem:[%s361 + $0xb0] sm:$0xff] %vm2659, %v2611
        %2683 = vst.msk [vmem:[%s361 + $0xb8] sm:$0xff] %vm2659, %v2616
        %2684 = vst.msk [vmem:[%s361 + $0xc0] sm:$0xff] %vm2659, %v2621
        %2685 = vst.msk [vmem:[%s361 + $0xc8] sm:$0xff] %vm2659, %v2626
        %2686 = vst.msk [vmem:[%s361 + $0xd0] sm:$0xff] %vm2659, %v2631
        %2687 = vst.msk [vmem:[%s361 + $0xd8] sm:$0xff] %vm2659, %v2636
        %2688 = vst.msk [vmem:[%s361 + $0xe0] sm:$0xff] %vm2659, %v2641
        %2689 = vst.msk [vmem:[%s361 + $0xe8] sm:$0xff] %vm2659, %v2646
        %2690 = vst.msk [vmem:[%s361 + $0xf0] sm:$0xff] %vm2659, %v2651
        %2691 = vst.msk [vmem:[%s361 + $0xf8] sm:$0xff] %vm2659, %v2656
        %s2692 = sand.u32 %s244, 1
        %s2693 = sand.u32 %s244, 1
        %s2694 = smul.addr %s2693, 256
        %s2695 = scalar_lea.vmem [#allocation2], %s2694
        // Predicated region
        $region61: #{encoding_with_network.1} parent=59 // pred_check
          %p2696 = pneg %p254
        $region62: #{encoding_with_network.1} parent=59 // pred_check_branch
          %2698 = sbr.rel (%p2696) target = $region64
        $region63: #{encoding_with_network.1} parent=59 // pred_region
          %s2699 = smul.u32 32, %s21
          %s2700 = ssub.s32 38, %s2699
          %p2701 = scmp.lt.s32.totalorder %s2700, 32
          %s2702 = scalar_select %p2701, %s2700, 32
          %s2703 = smul.u32 128, %s2702
          %p2704 = scmp.ne.s32.totalorder 0, %s2703
          %s2705 = smul.addr %s2699, 8
          %s2706 = scalar_lea.vmem %s10, %s2705
          // Predicated region
          $region65: #{encoding_with_network.1} parent=63 // pred_check
            %p2707 = pneg %p2704
          $region66: #{encoding_with_network.1} parent=63 // pred_check_branch
            %2709 = sbr.rel (%p2707) target = $region68
          $region67: #{encoding_with_network.1} parent=63 // pred_region
            // Predicated region
            $region69: #{encoding_with_network.1} parent=67 // pred_check
              _
            $region70: #{encoding_with_network.1} parent=67 // pred_check_branch
              %2711 = sbr.rel (0) target = $region72
            $region71: #{encoding_with_network.1} parent=67 // pred_region
              // Predicated region
              $region91: #{encoding_with_network.1} parent=71 // pred_check
                _
              $region92: #{encoding_with_network.1} parent=71 // pred_check_branch
                %2823 = sbr.rel (0) target = $region94
              $region93: #{encoding_with_network.1} parent=71 // pred_region
                %s2824 = sshrl.u32 %s2702, 5
                // While loop
                $region95: #{encoding_with_network.1} parent=93 // loop_pre_header
                  _
                $region96: #{encoding_with_network.1} parent=93 // loop_header
                  %s2826 = sphi 0, %s2828
                  %p2827 = scmp.ge.s32.totalorder %s2826, %s2824
                  %s2831 = sphi 0, %s2900
                  %s2832 = sphi %s2695, %s2903
                  %s2833 = sphi %s2706, %s2904
                $region97: #{encoding_with_network.1} parent=93 // loop_header_branch
                  %2830 = sbr.rel (%p2827) target = $region101
                $region98: #{encoding_with_network.1} parent=93 // loop_body
                  %v2834 = vld [vmem:[%s2832] sm:$0xff]
                  %2835 = vst [vmem:[%s2833] sm:$0xff] %v2834
                  %v2836 = vld [vmem:[%s2832 + $0x8] sm:$0xff]
                  %2837 = vst [vmem:[%s2833 + $0x8] sm:$0xff] %v2836
                  %v2838 = vld [vmem:[%s2832 + $0x10] sm:$0xff]
                  %2839 = vst [vmem:[%s2833 + $0x10] sm:$0xff] %v2838
                  %v2840 = vld [vmem:[%s2832 + $0x18] sm:$0xff]
                  %2841 = vst [vmem:[%s2833 + $0x18] sm:$0xff] %v2840
                  %v2842 = vld [vmem:[%s2832 + $0x20] sm:$0xff]
                  %2843 = vst [vmem:[%s2833 + $0x20] sm:$0xff] %v2842
                  %v2844 = vld [vmem:[%s2832 + $0x28] sm:$0xff]
                  %2845 = vst [vmem:[%s2833 + $0x28] sm:$0xff] %v2844
                  %v2846 = vld [vmem:[%s2832 + $0x30] sm:$0xff]
                  %2847 = vst [vmem:[%s2833 + $0x30] sm:$0xff] %v2846
                  %v2848 = vld [vmem:[%s2832 + $0x38] sm:$0xff]
                  %2849 = vst [vmem:[%s2833 + $0x38] sm:$0xff] %v2848
                  %v2850 = vld [vmem:[%s2832 + $0x40] sm:$0xff]
                  %2851 = vst [vmem:[%s2833 + $0x40] sm:$0xff] %v2850
                  %v2852 = vld [vmem:[%s2832 + $0x48] sm:$0xff]
                  %2853 = vst [vmem:[%s2833 + $0x48] sm:$0xff] %v2852
                  %v2854 = vld [vmem:[%s2832 + $0x50] sm:$0xff]
                  %2855 = vst [vmem:[%s2833 + $0x50] sm:$0xff] %v2854
                  %v2856 = vld [vmem:[%s2832 + $0x58] sm:$0xff]
                  %2857 = vst [vmem:[%s2833 + $0x58] sm:$0xff] %v2856
                  %v2858 = vld [vmem:[%s2832 + $0x60] sm:$0xff]
                  %2859 = vst [vmem:[%s2833 + $0x60] sm:$0xff] %v2858
                  %v2860 = vld [vmem:[%s2832 + $0x68] sm:$0xff]
                  %2861 = vst [vmem:[%s2833 + $0x68] sm:$0xff] %v2860
                  %v2862 = vld [vmem:[%s2832 + $0x70] sm:$0xff]
                  %2863 = vst [vmem:[%s2833 + $0x70] sm:$0xff] %v2862
                  %v2864 = vld [vmem:[%s2832 + $0x78] sm:$0xff]
                  %2865 = vst [vmem:[%s2833 + $0x78] sm:$0xff] %v2864
                  %v2866 = vld [vmem:[%s2832 + $0x80] sm:$0xff]
                  %2867 = vst [vmem:[%s2833 + $0x80] sm:$0xff] %v2866
                  %v2868 = vld [vmem:[%s2832 + $0x88] sm:$0xff]
                  %2869 = vst [vmem:[%s2833 + $0x88] sm:$0xff] %v2868
                  %v2870 = vld [vmem:[%s2832 + $0x90] sm:$0xff]
                  %2871 = vst [vmem:[%s2833 + $0x90] sm:$0xff] %v2870
                  %v2872 = vld [vmem:[%s2832 + $0x98] sm:$0xff]
                  %2873 = vst [vmem:[%s2833 + $0x98] sm:$0xff] %v2872
                  %v2874 = vld [vmem:[%s2832 + $0xa0] sm:$0xff]
                  %2875 = vst [vmem:[%s2833 + $0xa0] sm:$0xff] %v2874
                  %v2876 = vld [vmem:[%s2832 + $0xa8] sm:$0xff]
                  %2877 = vst [vmem:[%s2833 + $0xa8] sm:$0xff] %v2876
                  %v2878 = vld [vmem:[%s2832 + $0xb0] sm:$0xff]
                  %2879 = vst [vmem:[%s2833 + $0xb0] sm:$0xff] %v2878
                  %v2880 = vld [vmem:[%s2832 + $0xb8] sm:$0xff]
                  %2881 = vst [vmem:[%s2833 + $0xb8] sm:$0xff] %v2880
                  %v2882 = vld [vmem:[%s2832 + $0xc0] sm:$0xff]
                  %2883 = vst [vmem:[%s2833 + $0xc0] sm:$0xff] %v2882
                  %v2884 = vld [vmem:[%s2832 + $0xc8] sm:$0xff]
                  %2885 = vst [vmem:[%s2833 + $0xc8] sm:$0xff] %v2884
                  %v2886 = vld [vmem:[%s2832 + $0xd0] sm:$0xff]
                  %2887 = vst [vmem:[%s2833 + $0xd0] sm:$0xff] %v2886
                  %v2888 = vld [vmem:[%s2832 + $0xd8] sm:$0xff]
                  %2889 = vst [vmem:[%s2833 + $0xd8] sm:$0xff] %v2888
                  %v2890 = vld [vmem:[%s2832 + $0xe0] sm:$0xff]
                  %2891 = vst [vmem:[%s2833 + $0xe0] sm:$0xff] %v2890
                  %v2892 = vld [vmem:[%s2832 + $0xe8] sm:$0xff]
                  %2893 = vst [vmem:[%s2833 + $0xe8] sm:$0xff] %v2892
                  %v2894 = vld [vmem:[%s2832 + $0xf0] sm:$0xff]
                  %2895 = vst [vmem:[%s2833 + $0xf0] sm:$0xff] %v2894
                  %v2896 = vld [vmem:[%s2832 + $0xf8] sm:$0xff]
                  %2897 = vst [vmem:[%s2833 + $0xf8] sm:$0xff] %v2896
                  %s2898 = sadd.s32 1, %s2831
                  %p2899 = scmp.ge.s32.totalorder %s2898, %s2824
                  %s2900 = scalar_select %p2899, 0, %s2898
                  %s2901 = smul.u32 %s2900, 256
                  %s2902 = smul.u32 %s2900, 256
                  %s2903 = scalar_lea.vmem %s2695, %s2901 [#allocation2]
                  %s2904 = scalar_lea.vmem %s2706, %s2902
                $region99: #{encoding_with_network.1} parent=93 // loop_footer
                  %s2828 = sadd.s32 %s2826, 1
                $region100: #{encoding_with_network.1} parent=93 // loop_footer_branch
                  %2825 = sbr.rel target = $region96
                $region101: #{encoding_with_network.1} parent=93 // loop_exit
                  _
                %s2905 = sshrl.u32 %s2702, 5
                %s2906 = sand.u32 %s2702, 31
                %s2907 = smul.u32 %s2905, 32
                %s2908 = smul.u32 8, %s2907
                %s2909 = scalar_lea.vmem %s2695, %s2908 [#allocation2]
                %s2910 = smul.u32 8, %s2907
                %s2911 = scalar_lea.vmem %s2706, %s2910
                // While loop
                $region102: #{encoding_with_network.1} parent=93 // loop_pre_header
                  _
                $region103: #{encoding_with_network.1} parent=93 // loop_header
                  %s2913 = sphi 0, %s2915
                  %p2914 = scmp.ge.s32.totalorder %s2913, %s2906
                  %s2918 = sphi 0, %s2925
                  %s2919 = sphi %s2909, %s2928
                  %s2920 = sphi %s2911, %s2929
                $region104: #{encoding_with_network.1} parent=93 // loop_header_branch
                  %2917 = sbr.rel (%p2914) target = $region108
                $region105: #{encoding_with_network.1} parent=93 // loop_body
                  %v2921 = vld [vmem:[%s2919] sm:$0xff]
                  %2922 = vst [vmem:[%s2920] sm:$0xff] %v2921
                  %s2923 = sadd.s32 1, %s2918
                  %p2924 = scmp.ge.s32.totalorder %s2923, %s2906
                  %s2925 = scalar_select %p2924, 0, %s2923
                  %s2926 = smul.u32 %s2925, 8
                  %s2927 = smul.u32 %s2925, 8
                  %s2928 = scalar_lea.vmem %s2909, %s2926 [#allocation2]
                  %s2929 = scalar_lea.vmem %s2911, %s2927
                $region106: #{encoding_with_network.1} parent=93 // loop_footer
                  %s2915 = sadd.s32 %s2913, 1
                $region107: #{encoding_with_network.1} parent=93 // loop_footer_branch
                  %2912 = sbr.rel target = $region103
                $region108: #{encoding_with_network.1} parent=93 // loop_exit
                  _
              $region94: #{encoding_with_network.1} parent=71 // pred_fallthru
                _
              // Predicated region
              $region109: #{encoding_with_network.1} parent=71 // pred_check
                _
              $region110: #{encoding_with_network.1} parent=71 // pred_check_branch
                %2931 = sbr.rel target = $region112
              $region111: #{encoding_with_network.1} parent=71 // pred_region
                _
              $region112: #{encoding_with_network.1} parent=71 // pred_fallthru
                _
            $region72: #{encoding_with_network.1} parent=67 // pred_fallthru
              _
            // Predicated region
            $region73: #{encoding_with_network.1} parent=67 // pred_check
              _
            $region74: #{encoding_with_network.1} parent=67 // pred_check_branch
              %2713 = sbr.rel target = $region76
            $region75: #{encoding_with_network.1} parent=67 // pred_region
              %s2715 = ssub.s32 256, 1
              %s2716 = sshrl.u32 %s2702, 5
              // While loop
              $region77: #{encoding_with_network.1} parent=75 // loop_pre_header
                _
              $region78: #{encoding_with_network.1} parent=75 // loop_header
                %s2718 = sphi 0, %s2720
                %p2719 = scmp.ge.s32.totalorder %s2718, %s2716
                %s2723 = sphi 0, %s2792
                %s2724 = sphi %s2695, %s2795
                %s2725 = sphi %s2706, %s2796
              $region79: #{encoding_with_network.1} parent=75 // loop_header_branch
                %2722 = sbr.rel (%p2719) target = $region83
              $region80: #{encoding_with_network.1} parent=75 // loop_body
                %v2726 = vld [vmem:[%s2724] sm:%s2715]
                %2727 = vst [vmem:[%s2725] sm:%s2715] %v2726
                %v2728 = vld [vmem:[%s2724 + $0x8] sm:%s2715]
                %2729 = vst [vmem:[%s2725 + $0x8] sm:%s2715] %v2728
                %v2730 = vld [vmem:[%s2724 + $0x10] sm:%s2715]
                %2731 = vst [vmem:[%s2725 + $0x10] sm:%s2715] %v2730
                %v2732 = vld [vmem:[%s2724 + $0x18] sm:%s2715]
                %2733 = vst [vmem:[%s2725 + $0x18] sm:%s2715] %v2732
                %v2734 = vld [vmem:[%s2724 + $0x20] sm:%s2715]
                %2735 = vst [vmem:[%s2725 + $0x20] sm:%s2715] %v2734
                %v2736 = vld [vmem:[%s2724 + $0x28] sm:%s2715]
                %2737 = vst [vmem:[%s2725 + $0x28] sm:%s2715] %v2736
                %v2738 = vld [vmem:[%s2724 + $0x30] sm:%s2715]
                %2739 = vst [vmem:[%s2725 + $0x30] sm:%s2715] %v2738
                %v2740 = vld [vmem:[%s2724 + $0x38] sm:%s2715]
                %2741 = vst [vmem:[%s2725 + $0x38] sm:%s2715] %v2740
                %v2742 = vld [vmem:[%s2724 + $0x40] sm:%s2715]
                %2743 = vst [vmem:[%s2725 + $0x40] sm:%s2715] %v2742
                %v2744 = vld [vmem:[%s2724 + $0x48] sm:%s2715]
                %2745 = vst [vmem:[%s2725 + $0x48] sm:%s2715] %v2744
                %v2746 = vld [vmem:[%s2724 + $0x50] sm:%s2715]
                %2747 = vst [vmem:[%s2725 + $0x50] sm:%s2715] %v2746
                %v2748 = vld [vmem:[%s2724 + $0x58] sm:%s2715]
                %2749 = vst [vmem:[%s2725 + $0x58] sm:%s2715] %v2748
                %v2750 = vld [vmem:[%s2724 + $0x60] sm:%s2715]
                %2751 = vst [vmem:[%s2725 + $0x60] sm:%s2715] %v2750
                %v2752 = vld [vmem:[%s2724 + $0x68] sm:%s2715]
                %2753 = vst [vmem:[%s2725 + $0x68] sm:%s2715] %v2752
                %v2754 = vld [vmem:[%s2724 + $0x70] sm:%s2715]
                %2755 = vst [vmem:[%s2725 + $0x70] sm:%s2715] %v2754
                %v2756 = vld [vmem:[%s2724 + $0x78] sm:%s2715]
                %2757 = vst [vmem:[%s2725 + $0x78] sm:%s2715] %v2756
                %v2758 = vld [vmem:[%s2724 + $0x80] sm:%s2715]
                %2759 = vst [vmem:[%s2725 + $0x80] sm:%s2715] %v2758
                %v2760 = vld [vmem:[%s2724 + $0x88] sm:%s2715]
                %2761 = vst [vmem:[%s2725 + $0x88] sm:%s2715] %v2760
                %v2762 = vld [vmem:[%s2724 + $0x90] sm:%s2715]
                %2763 = vst [vmem:[%s2725 + $0x90] sm:%s2715] %v2762
                %v2764 = vld [vmem:[%s2724 + $0x98] sm:%s2715]
                %2765 = vst [vmem:[%s2725 + $0x98] sm:%s2715] %v2764
                %v2766 = vld [vmem:[%s2724 + $0xa0] sm:%s2715]
                %2767 = vst [vmem:[%s2725 + $0xa0] sm:%s2715] %v2766
                %v2768 = vld [vmem:[%s2724 + $0xa8] sm:%s2715]
                %2769 = vst [vmem:[%s2725 + $0xa8] sm:%s2715] %v2768
                %v2770 = vld [vmem:[%s2724 + $0xb0] sm:%s2715]
                %2771 = vst [vmem:[%s2725 + $0xb0] sm:%s2715] %v2770
                %v2772 = vld [vmem:[%s2724 + $0xb8] sm:%s2715]
                %2773 = vst [vmem:[%s2725 + $0xb8] sm:%s2715] %v2772
                %v2774 = vld [vmem:[%s2724 + $0xc0] sm:%s2715]
                %2775 = vst [vmem:[%s2725 + $0xc0] sm:%s2715] %v2774
                %v2776 = vld [vmem:[%s2724 + $0xc8] sm:%s2715]
                %2777 = vst [vmem:[%s2725 + $0xc8] sm:%s2715] %v2776
                %v2778 = vld [vmem:[%s2724 + $0xd0] sm:%s2715]
                %2779 = vst [vmem:[%s2725 + $0xd0] sm:%s2715] %v2778
                %v2780 = vld [vmem:[%s2724 + $0xd8] sm:%s2715]
                %2781 = vst [vmem:[%s2725 + $0xd8] sm:%s2715] %v2780
                %v2782 = vld [vmem:[%s2724 + $0xe0] sm:%s2715]
                %2783 = vst [vmem:[%s2725 + $0xe0] sm:%s2715] %v2782
                %v2784 = vld [vmem:[%s2724 + $0xe8] sm:%s2715]
                %2785 = vst [vmem:[%s2725 + $0xe8] sm:%s2715] %v2784
                %v2786 = vld [vmem:[%s2724 + $0xf0] sm:%s2715]
                %2787 = vst [vmem:[%s2725 + $0xf0] sm:%s2715] %v2786
                %v2788 = vld [vmem:[%s2724 + $0xf8] sm:%s2715]
                %2789 = vst [vmem:[%s2725 + $0xf8] sm:%s2715] %v2788
                %s2790 = sadd.s32 1, %s2723
                %p2791 = scmp.ge.s32.totalorder %s2790, %s2716
                %s2792 = scalar_select %p2791, 0, %s2790
                %s2793 = smul.u32 %s2792, 256
                %s2794 = smul.u32 %s2792, 256
                %s2795 = scalar_lea.vmem %s2695, %s2793 [#allocation2]
                %s2796 = scalar_lea.vmem %s2706, %s2794
              $region81: #{encoding_with_network.1} parent=75 // loop_footer
                %s2720 = sadd.s32 %s2718, 1
              $region82: #{encoding_with_network.1} parent=75 // loop_footer_branch
                %2717 = sbr.rel target = $region78
              $region83: #{encoding_with_network.1} parent=75 // loop_exit
                _
              %s2797 = sshrl.u32 %s2702, 5
              %s2798 = sand.u32 %s2702, 31
              %s2799 = smul.u32 %s2797, 32
              %s2800 = smul.u32 8, %s2799
              %s2801 = scalar_lea.vmem %s2695, %s2800 [#allocation2]
              %s2802 = smul.u32 8, %s2799
              %s2803 = scalar_lea.vmem %s2706, %s2802
              // While loop
              $region84: #{encoding_with_network.1} parent=75 // loop_pre_header
                _
              $region85: #{encoding_with_network.1} parent=75 // loop_header
                %s2805 = sphi 0, %s2807
                %p2806 = scmp.ge.s32.totalorder %s2805, %s2798
                %s2810 = sphi 0, %s2817
                %s2811 = sphi %s2801, %s2820
                %s2812 = sphi %s2803, %s2821
              $region86: #{encoding_with_network.1} parent=75 // loop_header_branch
                %2809 = sbr.rel (%p2806) target = $region90
              $region87: #{encoding_with_network.1} parent=75 // loop_body
                %v2813 = vld [vmem:[%s2811] sm:%s2715]
                %2814 = vst [vmem:[%s2812] sm:%s2715] %v2813
                %s2815 = sadd.s32 1, %s2810
                %p2816 = scmp.ge.s32.totalorder %s2815, %s2798
                %s2817 = scalar_select %p2816, 0, %s2815
                %s2818 = smul.u32 %s2817, 8
                %s2819 = smul.u32 %s2817, 8
                %s2820 = scalar_lea.vmem %s2801, %s2818 [#allocation2]
                %s2821 = scalar_lea.vmem %s2803, %s2819
              $region88: #{encoding_with_network.1} parent=75 // loop_footer
                %s2807 = sadd.s32 %s2805, 1
              $region89: #{encoding_with_network.1} parent=75 // loop_footer_branch
                %2804 = sbr.rel target = $region85
              $region90: #{encoding_with_network.1} parent=75 // loop_exit
                _
            $region76: #{encoding_with_network.1} parent=67 // pred_fallthru
              _
          $region68: #{encoding_with_network.1} parent=63 // pred_fallthru
            _
          %2932 = vnop
        $region64: #{encoding_with_network.1} parent=59 // pred_fallthru
          _
      $region60: #{encoding_with_network.1} parent=5 // pred_fallthru
        _
      %p2933 = scmp.le.s32.totalorder 2, %s16
      // Predicated region
      $region113: #{encoding_with_network.1} parent=5 // pred_check
        %p2934 = pneg %p2933
      $region114: #{encoding_with_network.1} parent=5 // pred_check_branch
        %2936 = sbr.rel (%p2934) target = $region116
      $region115: #{encoding_with_network.1} parent=5 // pred_region
        %s2937 = ssub.s32 %s16, 2
        // Predicated region
        $region117: #{encoding_with_network.1} parent=115 // pred_check
          %p2938 = pneg %p260
        $region118: #{encoding_with_network.1} parent=115 // pred_check_branch
          %2940 = sbr.rel (%p2938) target = $region120
        $region119: #{encoding_with_network.1} parent=115 // pred_region
          %s2941 = sand.u32 %s245, 1
          %s2942 = sand.u32 %s245, 1
          %s2943 = smul.addr %s2942, 256
          %s2944 = scalar_lea.vmem [#allocation2], %s2943
        $region120: #{encoding_with_network.1} parent=115 // pred_fallthru
          _
      $region116: #{encoding_with_network.1} parent=5 // pred_fallthru
        _
    $region6: #{encoding_with_network.1} parent=1 // loop_footer
      %s20 = sadd.s32 1, %s16
    $region7: #{encoding_with_network.1} parent=1 // loop_footer_branch
      %15 = sbr.rel target = $region3
    $region8: #{encoding_with_network.1} parent=1 // loop_exit
      _

</llo_original>
